<compile_context>
chip_gen: v7x
topology: tpu7x:2x2x1
jax: 0.10.0
libtpu: 0.0.40
codegen_flags: <defaults>
</compile_context>

<pallas_src>
import jax
import jax.numpy as jnp
from jax.experimental import pallas as pl
from jax.experimental.pallas import tpu as pltpu


def _round_up(n, m):
    return ((n + m - 1) // m) * m


def mlp_kernel(x_ref,
               w1_ref, b1_ref,
               w2_ref, b2_ref,
               w3_ref, b3_ref,
               w4_ref, b4_ref,
               w5_ref, b5_ref,
               o_ref):
    # One batch tile (TB rows) per grid step; weights/biases use constant block
    # indices so they stay VMEM-resident across the whole grid.  MXU matmuls
    # take bf16 operands and accumulate in f32; bias/ReLU stay f32 on the VPU.
    h = x_ref[...].astype(jnp.bfloat16)   # no-op when the caller passes bf16 x

    h = jnp.dot(h, w1_ref[...],
                preferred_element_type=jnp.float32) + b1_ref[...]
    h = jnp.maximum(h, 0.0)

    h = jnp.dot(h.astype(jnp.bfloat16), w2_ref[...],
                preferred_element_type=jnp.float32) + b2_ref[...]
    h = jnp.maximum(h, 0.0)

    h = jnp.dot(h.astype(jnp.bfloat16), w3_ref[...],
                preferred_element_type=jnp.float32) + b3_ref[...]
    h = jnp.maximum(h, 0.0)

    h = jnp.dot(h.astype(jnp.bfloat16), w4_ref[...],
                preferred_element_type=jnp.float32) + b4_ref[...]
    h = jnp.maximum(h, 0.0)

    h = jnp.dot(h.astype(jnp.bfloat16), w5_ref[...],
                preferred_element_type=jnp.float32) + b5_ref[...]

    o_ref[...] = h.astype(o_ref.dtype)     # bf16, lane-dense (128 lanes)


def first_mlp_forward(x, params, *, batch_tile=512, out_dtype=jnp.float32):
    """x: (B, input_size) f32 or bf16.  params: list of (W (in,out) bf16, b (1,out) f32)."""
    B, in_dim = x.shape
    num_classes = params[-1][0].shape[1]

    # --- lane-dense output: pad final layer to the next multiple of 128 ------
    out_pad = _round_up(max(num_classes, 128), 128)
    w5, b5 = params[-1]
    if out_pad != num_classes:
        w5 = jnp.zeros((w5.shape[0], out_pad), w5.dtype).at[:, :num_classes].set(w5)
        b5 = jnp.zeros((1, out_pad), b5.dtype).at[:, :num_classes].set(b5)
    padded_params = list(params[:-1]) + [(w5, b5)]

    # --- batch tiling: tb is a multiple of 128 (MXU M-fill, bf16 packing) ----
    batch_tile = max(128, _round_up(batch_tile, 128))
    tb = min(batch_tile, _round_up(B, 128))

    # VMEM guard (v7x: 64 MiB physical / 32 MiB scoped default): x and out
    # tiles are double-buffered by the pipeline; cap tb for very large in_dim.
    def _tile_bytes(t):
        return 2 * t * (in_dim * x.dtype.itemsize + out_pad * 2)
    while tb >= 256 and _tile_bytes(tb) > (16 << 20):
        tb //= 2

    b_pad = _round_up(B, tb)

    # v7x megacore: ensure >=2 grid steps when the batch is big enough so the
    # "parallel" axis can shard across both TensorCores.
    if b_pad // tb == 1 and tb >= 256:
        tb //= 2                       # still a multiple of 16 (>=128)
        b_pad = _round_up(B, tb)

    if b_pad != B:
        x = jnp.pad(x, ((0, b_pad - B), (0, 0)))

    flat_args = [x]
    for w, b in padded_params:
        flat_args.extend([w, b])

    in_specs = [pl.BlockSpec((tb, in_dim), lambda i: (i, 0))]
    for w, b in padded_params:
        in_specs.append(pl.BlockSpec(w.shape, lambda i: (0, 0)))  # weights resident
        in_specs.append(pl.BlockSpec(b.shape, lambda i: (0, 0)))  # biases resident
    out_specs = pl.BlockSpec((tb, out_pad), lambda i: (i, 0))

    flops = 2 * b_pad * sum(int(w.shape[0]) * int(w.shape[1])
                            for w, _ in padded_params)
    bytes_accessed = (
        x.size * x.dtype.itemsize
        + sum(w.size * w.dtype.itemsize + b.size * b.dtype.itemsize
              for w, b in padded_params)
        + b_pad * out_pad * 2)   # bf16 output writeback

    out = pl.pallas_call(
        mlp_kernel,
        out_shape=jax.ShapeDtypeStruct((b_pad, out_pad), jnp.bfloat16),
        grid=(b_pad // tb,),
        in_specs=in_specs,
        out_specs=out_specs,
        compiler_params=pltpu.CompilerParams(
            dimension_semantics=("parallel",)),
        cost_estimate=pl.CostEstimate(
            flops=flops, transcendentals=0, bytes_accessed=bytes_accessed),
    )(*flat_args)

    out = out[:B, :num_classes]
    return out.astype(out_dtype)


def init_params(key, input_size, num_classes):
    """PyTorch-Linear-like uniform fan-in init; weights bf16, biases f32."""
    dims = [input_size, 256, 512, 256, 128, num_classes]
    params = []
    for i in range(len(dims) - 1):
        fan_in, fan_out = dims[i], dims[i + 1]
        key, kw, kb = jax.random.split(key, 3)
        bound = 1.0 / jnp.sqrt(fan_in)
        w = jax.random.uniform(kw, (fan_in, fan_out), jnp.float32, -bound, bound)
        b = jax.random.uniform(kb, (1, fan_out), jnp.float32, -bound, bound)
        params.append((w.astype(jnp.bfloat16), b))
    return params


def reference_forward(x, params):
    """Pure-JAX reference with the same bf16-operand / f32-accumulate / bf16-output math."""
    h = x
    n = len(params)
    for i, (w, b) in enumerate(params):
        h = jnp.dot(h.astype(jnp.bfloat16), w.astype(jnp.bfloat16),
                    preferred_element_type=jnp.float32) + b
        if i < n - 1:
            h = jnp.maximum(h, 0.0)
    return h.astype(jnp.bfloat16).astype(jnp.float32)


if __name__ == "__main__":
    B = 8
    INPUT_SIZE = 64
    NUM_CLASSES = 10

    key = jax.random.PRNGKey(0)
    key, kx = jax.random.split(key)
    x = jax.random.normal(kx, (B, INPUT_SIZE), jnp.float32)

    params = init_params(key, INPUT_SIZE, NUM_CLASSES)

    out = first_mlp_forward(x, params)
    out = jax.block_until_ready(out)

    ref = reference_forward(x, params)
    assert out.shape == (B, NUM_CLASSES), out.shape
    assert jnp.allclose(out, ref, atol=1e-2, rtol=1e-2), "mismatch vs reference"

    print("KERNEL_OK")
</pallas_src>

<mosaic_0001>
module attributes {stable_mosaic.version = 11 : i64} {
  func.func @mlp_kernel(%arg0: i32, %arg1: memref<128x64xf32, #tpu.memory_space<vmem>>, %arg2: memref<64x256xbf16, #tpu.memory_space<vmem>>, %arg3: memref<1x256xf32, #tpu.memory_space<vmem>>, %arg4: memref<256x512xbf16, #tpu.memory_space<vmem>>, %arg5: memref<1x512xf32, #tpu.memory_space<vmem>>, %arg6: memref<512x256xbf16, #tpu.memory_space<vmem>>, %arg7: memref<1x256xf32, #tpu.memory_space<vmem>>, %arg8: memref<256x128xbf16, #tpu.memory_space<vmem>>, %arg9: memref<1x128xf32, #tpu.memory_space<vmem>>, %arg10: memref<128x128xbf16, #tpu.memory_space<vmem>>, %arg11: memref<1x128xf32, #tpu.memory_space<vmem>>, %arg12: memref<128x128xbf16, #tpu.memory_space<vmem>>) attributes {dimension_semantics = [#tpu.dimension_semantics<parallel>], iteration_bounds = array<i64: 1>, scalar_prefetch = 0 : i64, scratch_operands = 0 : i64, tpu.core_type = #tpu.core_type<tc>, window_params = [{transform_indices = @transform_0, window_bounds = array<i64: 128, 64>}, {pipeline_mode = #tpu.pipeline_mode<synchronous>, transform_indices = @transform_1, window_bounds = array<i64: 64, 256>}, {pipeline_mode = #tpu.pipeline_mode<synchronous>, transform_indices = @transform_2, window_bounds = array<i64: 1, 256>}, {pipeline_mode = #tpu.pipeline_mode<synchronous>, transform_indices = @transform_3, window_bounds = array<i64: 256, 512>}, {pipeline_mode = #tpu.pipeline_mode<synchronous>, transform_indices = @transform_4, window_bounds = array<i64: 1, 512>}, {pipeline_mode = #tpu.pipeline_mode<synchronous>, transform_indices = @transform_5, window_bounds = array<i64: 512, 256>}, {pipeline_mode = #tpu.pipeline_mode<synchronous>, transform_indices = @transform_6, window_bounds = array<i64: 1, 256>}, {pipeline_mode = #tpu.pipeline_mode<synchronous>, transform_indices = @transform_7, window_bounds = array<i64: 256, 128>}, {pipeline_mode = #tpu.pipeline_mode<synchronous>, transform_indices = @transform_8, window_bounds = array<i64: 1, 128>}, {pipeline_mode = #tpu.pipeline_mode<synchronous>, transform_indices = @transform_9, window_bounds = array<i64: 128, 128>}, {pipeline_mode = #tpu.pipeline_mode<synchronous>, transform_indices = @transform_10, window_bounds = array<i64: 1, 128>}, {transform_indices = @transform_11, window_bounds = array<i64: 128, 128>}]} {
    %c0 = arith.constant 0 : index
    %c0_0 = arith.constant 0 : index
    %0 = vector.load %arg1[%c0, %c0_0] : memref<128x64xf32, #tpu.memory_space<vmem>>, vector<128x64xf32>
    %1 = arith.truncf %0 : vector<128x64xf32> to vector<128x64xbf16>
    %c0_1 = arith.constant 0 : index
    %c0_2 = arith.constant 0 : index
    %2 = vector.load %arg2[%c0_1, %c0_2] : memref<64x256xbf16, #tpu.memory_space<vmem>>, vector<64x256xbf16>
    %cst = arith.constant dense<0.000000e+00> : vector<128x256xf32>
    %3 = tpu.matmul %1, %2, %cst {dimension_numbers = #tpu.dot_dimension_numbers<[1], [0], [0], [1], [0, 0, 1, 1], [], []>} : vector<128x64xbf16>, vector<64x256xbf16>, vector<128x256xf32> -> vector<128x256xf32>
    %c0_3 = arith.constant 0 : index
    %c0_4 = arith.constant 0 : index
    %4 = vector.load %arg3[%c0_3, %c0_4] : memref<1x256xf32, #tpu.memory_space<vmem>>, vector<1x256xf32>
    %5 = vector.broadcast %4 : vector<1x256xf32> to vector<128x256xf32>
    %6 = arith.addf %3, %5 : vector<128x256xf32>
    %cst_5 = arith.constant 0.000000e+00 : f32
    %7 = vector.broadcast %cst_5 : f32 to vector<128x256xf32>
    %8 = arith.maximumf %6, %7 : vector<128x256xf32>
    %9 = arith.truncf %8 : vector<128x256xf32> to vector<128x256xbf16>
    %c0_6 = arith.constant 0 : index
    %c0_7 = arith.constant 0 : index
    %10 = vector.load %arg4[%c0_6, %c0_7] : memref<256x512xbf16, #tpu.memory_space<vmem>>, vector<256x512xbf16>
    %cst_8 = arith.constant dense<0.000000e+00> : vector<128x512xf32>
    %11 = tpu.matmul %9, %10, %cst_8 {dimension_numbers = #tpu.dot_dimension_numbers<[1], [0], [0], [1], [0, 0, 1, 1], [], []>} : vector<128x256xbf16>, vector<256x512xbf16>, vector<128x512xf32> -> vector<128x512xf32>
    %c0_9 = arith.constant 0 : index
    %c0_10 = arith.constant 0 : index
    %12 = vector.load %arg5[%c0_9, %c0_10] : memref<1x512xf32, #tpu.memory_space<vmem>>, vector<1x512xf32>
    %13 = vector.broadcast %12 : vector<1x512xf32> to vector<128x512xf32>
    %14 = arith.addf %11, %13 : vector<128x512xf32>
    %cst_11 = arith.constant 0.000000e+00 : f32
    %15 = vector.broadcast %cst_11 : f32 to vector<128x512xf32>
    %16 = arith.maximumf %14, %15 : vector<128x512xf32>
    %17 = arith.truncf %16 : vector<128x512xf32> to vector<128x512xbf16>
    %c0_12 = arith.constant 0 : index
    %c0_13 = arith.constant 0 : index
    %18 = vector.load %arg6[%c0_12, %c0_13] : memref<512x256xbf16, #tpu.memory_space<vmem>>, vector<512x256xbf16>
    %cst_14 = arith.constant dense<0.000000e+00> : vector<128x256xf32>
    %19 = tpu.matmul %17, %18, %cst_14 {dimension_numbers = #tpu.dot_dimension_numbers<[1], [0], [0], [1], [0, 0, 1, 1], [], []>} : vector<128x512xbf16>, vector<512x256xbf16>, vector<128x256xf32> -> vector<128x256xf32>
    %c0_15 = arith.constant 0 : index
    %c0_16 = arith.constant 0 : index
    %20 = vector.load %arg7[%c0_15, %c0_16] : memref<1x256xf32, #tpu.memory_space<vmem>>, vector<1x256xf32>
    %21 = vector.broadcast %20 : vector<1x256xf32> to vector<128x256xf32>
    %22 = arith.addf %19, %21 : vector<128x256xf32>
    %cst_17 = arith.constant 0.000000e+00 : f32
    %23 = vector.broadcast %cst_17 : f32 to vector<128x256xf32>
    %24 = arith.maximumf %22, %23 : vector<128x256xf32>
    %25 = arith.truncf %24 : vector<128x256xf32> to vector<128x256xbf16>
    %c0_18 = arith.constant 0 : index
    %c0_19 = arith.constant 0 : index
    %26 = vector.load %arg8[%c0_18, %c0_19] : memref<256x128xbf16, #tpu.memory_space<vmem>>, vector<256x128xbf16>
    %cst_20 = arith.constant dense<0.000000e+00> : vector<128x128xf32>
    %27 = tpu.matmul %25, %26, %cst_20 {dimension_numbers = #tpu.dot_dimension_numbers<[1], [0], [0], [1], [0, 0, 1, 1], [], []>} : vector<128x256xbf16>, vector<256x128xbf16>, vector<128x128xf32> -> vector<128x128xf32>
    %c0_21 = arith.constant 0 : index
    %c0_22 = arith.constant 0 : index
    %28 = vector.load %arg9[%c0_21, %c0_22] : memref<1x128xf32, #tpu.memory_space<vmem>>, vector<1x128xf32>
    %29 = vector.broadcast %28 : vector<1x128xf32> to vector<128x128xf32>
    %30 = arith.addf %27, %29 : vector<128x128xf32>
    %cst_23 = arith.constant 0.000000e+00 : f32
    %31 = vector.broadcast %cst_23 : f32 to vector<128x128xf32>
    %32 = arith.maximumf %30, %31 : vector<128x128xf32>
    %33 = arith.truncf %32 : vector<128x128xf32> to vector<128x128xbf16>
    %c0_24 = arith.constant 0 : index
    %c0_25 = arith.constant 0 : index
    %34 = vector.load %arg10[%c0_24, %c0_25] : memref<128x128xbf16, #tpu.memory_space<vmem>>, vector<128x128xbf16>
    %cst_26 = arith.constant dense<0.000000e+00> : vector<128x128xf32>
    %35 = tpu.matmul %33, %34, %cst_26 {dimension_numbers = #tpu.dot_dimension_numbers<[1], [0], [0], [1], [0, 0, 1, 1], [], []>} : vector<128x128xbf16>, vector<128x128xbf16>, vector<128x128xf32> -> vector<128x128xf32>
    %c0_27 = arith.constant 0 : index
    %c0_28 = arith.constant 0 : index
    %36 = vector.load %arg11[%c0_27, %c0_28] : memref<1x128xf32, #tpu.memory_space<vmem>>, vector<1x128xf32>
    %37 = vector.broadcast %36 : vector<1x128xf32> to vector<128x128xf32>
    %38 = arith.addf %35, %37 : vector<128x128xf32>
    %39 = arith.truncf %38 : vector<128x128xf32> to vector<128x128xbf16>
    %c0_29 = arith.constant 0 : index
    %c0_30 = arith.constant 0 : index
    %40 = vector.load %arg12[%c0_29, %c0_30] : memref<128x128xbf16, #tpu.memory_space<vmem>>, vector<128x128xbf16>
    tpu.vector_store %arg12[%c0_29, %c0_30], %39 {strides = array<i32>} : memref<128x128xbf16, #tpu.memory_space<vmem>>, vector<128x128xbf16>,
    return
  }
  func.func @transform_0(%arg0: i32) -> (i32, i32) {
    %c0_i32 = arith.constant 0 : i32
    %c0_i32_0 = arith.constant 0 : i32
    return %arg0, %c0_i32 : i32, i32
  }
  func.func @transform_1(%arg0: i32) -> (i32, i32) {
    %c0_i32 = arith.constant 0 : i32
    %c0_i32_0 = arith.constant 0 : i32
    %c0_i32_1 = arith.constant 0 : i32
    return %c0_i32, %c0_i32_0 : i32, i32
  }
  func.func @transform_2(%arg0: i32) -> (i32, i32) {
    %c0_i32 = arith.constant 0 : i32
    %c0_i32_0 = arith.constant 0 : i32
    %c0_i32_1 = arith.constant 0 : i32
    return %c0_i32, %c0_i32_0 : i32, i32
  }
  func.func @transform_3(%arg0: i32) -> (i32, i32) {
    %c0_i32 = arith.constant 0 : i32
    %c0_i32_0 = arith.constant 0 : i32
    %c0_i32_1 = arith.constant 0 : i32
    return %c0_i32, %c0_i32_0 : i32, i32
  }
  func.func @transform_4(%arg0: i32) -> (i32, i32) {
    %c0_i32 = arith.constant 0 : i32
    %c0_i32_0 = arith.constant 0 : i32
    %c0_i32_1 = arith.constant 0 : i32
    return %c0_i32, %c0_i32_0 : i32, i32
  }
  func.func @transform_5(%arg0: i32) -> (i32, i32) {
    %c0_i32 = arith.constant 0 : i32
    %c0_i32_0 = arith.constant 0 : i32
    %c0_i32_1 = arith.constant 0 : i32
    return %c0_i32, %c0_i32_0 : i32, i32
  }
  func.func @transform_6(%arg0: i32) -> (i32, i32) {
    %c0_i32 = arith.constant 0 : i32
    %c0_i32_0 = arith.constant 0 : i32
    %c0_i32_1 = arith.constant 0 : i32
    return %c0_i32, %c0_i32_0 : i32, i32
  }
  func.func @transform_7(%arg0: i32) -> (i32, i32) {
    %c0_i32 = arith.constant 0 : i32
    %c0_i32_0 = arith.constant 0 : i32
    %c0_i32_1 = arith.constant 0 : i32
    return %c0_i32, %c0_i32_0 : i32, i32
  }
  func.func @transform_8(%arg0: i32) -> (i32, i32) {
    %c0_i32 = arith.constant 0 : i32
    %c0_i32_0 = arith.constant 0 : i32
    %c0_i32_1 = arith.constant 0 : i32
    return %c0_i32, %c0_i32_0 : i32, i32
  }
  func.func @transform_9(%arg0: i32) -> (i32, i32) {
    %c0_i32 = arith.constant 0 : i32
    %c0_i32_0 = arith.constant 0 : i32
    %c0_i32_1 = arith.constant 0 : i32
    return %c0_i32, %c0_i32_0 : i32, i32
  }
  func.func @transform_10(%arg0: i32) -> (i32, i32) {
    %c0_i32 = arith.constant 0 : i32
    %c0_i32_0 = arith.constant 0 : i32
    %c0_i32_1 = arith.constant 0 : i32
    return %c0_i32, %c0_i32_0 : i32, i32
  }
  func.func @transform_11(%arg0: i32) -> (i32, i32) {
    %c0_i32 = arith.constant 0 : i32
    %c0_i32_0 = arith.constant 0 : i32
    return %arg0, %c0_i32 : i32, i32
  }
}

</mosaic_0001>

<llo_original>
// kernel: tpu_custom_call.1
$region0: #{tpu_custom_call.1}
  #allocation0 [shape = 'u32[]', space=smem, size = 0x4, offset = 0x4, fixed_abs, tag = 'smem constant byte address 0x4 - core index']
  #allocation1 [shape = 'u32[144,128]{1,0:T(1,128)}', space=vmem, size = 0x12000, scoped, tag = 'internal scratch']
  %s0 = inlined_call_operand.vmem [shape: f32[128,64], index: 0, kind: input, shape index: {}]
  %s1 = inlined_call_operand.vmem [shape: bf16[64,256], index: 1, kind: input, shape index: {}]
  %s2 = inlined_call_operand.vmem [shape: f32[1,256], index: 2, kind: input, shape index: {}]
  %s3 = inlined_call_operand.hbm [shape: bf16[256,512], index: 3, kind: input, shape index: {}]
  %s4 = inlined_call_operand.vmem [shape: f32[1,512], index: 4, kind: input, shape index: {}]
  %s5 = inlined_call_operand.hbm [shape: bf16[512,256], index: 5, kind: input, shape index: {}]
  %s6 = inlined_call_operand.vmem [shape: f32[1,256], index: 6, kind: input, shape index: {}]
  %s7 = inlined_call_operand.vmem [shape: bf16[256,128], index: 7, kind: input, shape index: {}]
  %s8 = inlined_call_operand.vmem [shape: f32[1,128], index: 8, kind: input, shape index: {}]
  %s9 = inlined_call_operand.hbm [shape: bf16[128,128], index: 9, kind: input, shape index: {}]
  %s10 = inlined_call_operand.vmem [shape: f32[1,128], index: 10, kind: input, shape index: {}]
  %s11 = inlined_call_operand.hbm [shape: bf16[128,128], index: 11, kind: output, shape index: {}]
  %s12 = sld [smem:[#allocation0]]
  $region66: #{tpu_custom_call.1} parent=0
    _
  %s14 = ssub.s32 1, %s12
  %s15 = scalar_select 0, %s14, %s12
  $region1: #{tpu_custom_call.1} parent=0
    #allocation2 [shape = 'u8[262144]{0}', space=vmem, size = 0x40000, scoped, tag = 'input window, operand 3, single buffered']
    #allocation3 [shape = 's32[1]{0}', space=sflag, size = 0x4, scoped, tag = 'scoped memory for tpu_custom_call.1']
    #allocation4 [shape = 's32[1]{0}', space=sflag, size = 0x4, scoped, tag = 'scoped memory for tpu_custom_call.1']
    #allocation5 [shape = 'u8[262144]{0}', space=vmem, size = 0x40000, scoped, tag = 'input window, operand 5, single buffered']
    #allocation6 [shape = 's32[1]{0}', space=sflag, size = 0x4, scoped, tag = 'scoped memory for tpu_custom_call.1']
    #allocation7 [shape = 'u8[32768]{0}', space=vmem, size = 0x8000, scoped, tag = 'input window, operand 9, single buffered']
    #allocation8 [shape = 'u8[32768]{0}', space=vmem, size = 0x8000, scoped, tag = 'output window, operand 0, single buffered']
    %16 = vsyncpa [#allocation3], 0
    %17 = vsyncpa [#allocation6], 0
    %18 = vsyncpa [#allocation4], 0
    // Predicated region
    $region2: #{tpu_custom_call.1} parent=1 // pred_check
      _
    $region3: #{tpu_custom_call.1} parent=1 // pred_check_branch
      %20 = sbr.rel (0) target = $region5
    $region4: #{tpu_custom_call.1} parent=1 // pred_region
      _
    $region5: #{tpu_custom_call.1} parent=1 // pred_fallthru
      _
    // Predicated region
    $region6: #{tpu_custom_call.1} parent=1 // pred_check
      _
    $region7: #{tpu_custom_call.1} parent=1 // pred_check_branch
      %22 = sbr.rel (0) target = $region9
    $region8: #{tpu_custom_call.1} parent=1 // pred_region
      _
    $region9: #{tpu_custom_call.1} parent=1 // pred_fallthru
      _
    // Predicated region
    $region10: #{tpu_custom_call.1} parent=1 // pred_check
      _
    $region11: #{tpu_custom_call.1} parent=1 // pred_check_branch
      %24 = sbr.rel (0) target = $region13
    $region12: #{tpu_custom_call.1} parent=1 // pred_region
      _
    $region13: #{tpu_custom_call.1} parent=1 // pred_fallthru
      _
    // Predicated region
    $region14: #{tpu_custom_call.1} parent=1 // pred_check
      _
    $region15: #{tpu_custom_call.1} parent=1 // pred_check_branch
      %26 = sbr.rel (0) target = $region17
    $region16: #{tpu_custom_call.1} parent=1 // pred_region
      %s28 = ssub.s32 8192, 8192
      %29 = vsyncadd [#allocation3], %s28
      %s30 = sshll.u32 [#allocation2], 4
      %s31 = int_to_ptr.vmem [resolvable:$true] %s30
      %36 = dma.hbm_to_vmem [thread:$0]  %s3, 8192, %s31, [#allocation3], 256, 256, 16
    $region17: #{tpu_custom_call.1} parent=1 // pred_fallthru
      _
    // Predicated region
    $region18: #{tpu_custom_call.1} parent=1 // pred_check
      _
    $region19: #{tpu_custom_call.1} parent=1 // pred_check_branch
      %38 = sbr.rel (0) target = $region21
    $region20: #{tpu_custom_call.1} parent=1 // pred_region
      _
    $region21: #{tpu_custom_call.1} parent=1 // pred_fallthru
      _
    // Predicated region
    $region22: #{tpu_custom_call.1} parent=1 // pred_check
      _
    $region23: #{tpu_custom_call.1} parent=1 // pred_check_branch
      %40 = sbr.rel (0) target = $region25
    $region24: #{tpu_custom_call.1} parent=1 // pred_region
      %s42 = ssub.s32 8192, 8192
      %43 = vsyncadd [#allocation6], %s42
      %s44 = sshll.u32 [#allocation5], 4
      %s45 = int_to_ptr.vmem [resolvable:$true] %s44
      %50 = dma.hbm_to_vmem [thread:$0]  %s5, 8192, %s45, [#allocation6], 128, 128, 8
    $region25: #{tpu_custom_call.1} parent=1 // pred_fallthru
      _
    // Predicated region
    $region26: #{tpu_custom_call.1} parent=1 // pred_check
      _
    $region27: #{tpu_custom_call.1} parent=1 // pred_check_branch
      %52 = sbr.rel (0) target = $region29
    $region28: #{tpu_custom_call.1} parent=1 // pred_region
      _
    $region29: #{tpu_custom_call.1} parent=1 // pred_fallthru
      _
    // Predicated region
    $region30: #{tpu_custom_call.1} parent=1 // pred_check
      _
    $region31: #{tpu_custom_call.1} parent=1 // pred_check_branch
      %54 = sbr.rel (0) target = $region33
    $region32: #{tpu_custom_call.1} parent=1 // pred_region
      _
    $region33: #{tpu_custom_call.1} parent=1 // pred_fallthru
      _
    // Predicated region
    $region34: #{tpu_custom_call.1} parent=1 // pred_check
      _
    $region35: #{tpu_custom_call.1} parent=1 // pred_check_branch
      %56 = sbr.rel (0) target = $region37
    $region36: #{tpu_custom_call.1} parent=1 // pred_region
      _
    $region37: #{tpu_custom_call.1} parent=1 // pred_fallthru
      _
    // Predicated region
    $region38: #{tpu_custom_call.1} parent=1 // pred_check
      _
    $region39: #{tpu_custom_call.1} parent=1 // pred_check_branch
      %58 = sbr.rel (0) target = $region41
    $region40: #{tpu_custom_call.1} parent=1 // pred_region
      %s60 = ssub.s32 1024, 1024
      %61 = vsyncadd [#allocation6], %s60
      %s62 = sshll.u32 [#allocation7], 4
      %s63 = int_to_ptr.vmem [resolvable:$true] %s62
      %68 = dma.hbm_to_vmem [thread:$0]  %s9, 1024, %s63, [#allocation6], 64, 64, 4
    $region41: #{tpu_custom_call.1} parent=1 // pred_fallthru
      _
    // Predicated region
    $region42: #{tpu_custom_call.1} parent=1 // pred_check
      _
    $region43: #{tpu_custom_call.1} parent=1 // pred_check_branch
      %70 = sbr.rel (0) target = $region45
    $region44: #{tpu_custom_call.1} parent=1 // pred_region
      _
    $region45: #{tpu_custom_call.1} parent=1 // pred_fallthru
      _
    // Predicated region
    $region46: #{tpu_custom_call.1} parent=1 // pred_check
      _
    $region47: #{tpu_custom_call.1} parent=1 // pred_check_branch
      %72 = sbr.rel (0) target = $region49
    $region48: #{tpu_custom_call.1} parent=1 // pred_region
      %73 = dma.done [#allocation3], 8192
    $region49: #{tpu_custom_call.1} parent=1 // pred_fallthru
      _
    // Predicated region
    $region50: #{tpu_custom_call.1} parent=1 // pred_check
      _
    $region51: #{tpu_custom_call.1} parent=1 // pred_check_branch
      %75 = sbr.rel (0) target = $region53
    $region52: #{tpu_custom_call.1} parent=1 // pred_region
      %76 = dma.done [#allocation6], 8192
    $region53: #{tpu_custom_call.1} parent=1 // pred_fallthru
      _
    // Predicated region
    $region54: #{tpu_custom_call.1} parent=1 // pred_check
      _
    $region55: #{tpu_custom_call.1} parent=1 // pred_check_branch
      %78 = sbr.rel (0) target = $region57
    $region56: #{tpu_custom_call.1} parent=1 // pred_region
      %79 = dma.done [#allocation6], 1024
    $region57: #{tpu_custom_call.1} parent=1 // pred_fallthru
      _
    %v81 = vld [vmem:[%s0] sm:$0xff]
    %v82 = vld [vmem:[%s0 + $0x8] sm:$0xff]
    %v83 = vld [vmem:[%s0 + $0x10] sm:$0xff]
    %v84 = vld [vmem:[%s0 + $0x18] sm:$0xff]
    %v85 = vld [vmem:[%s0 + $0x20] sm:$0xff]
    %v86 = vld [vmem:[%s0 + $0x28] sm:$0xff]
    %v87 = vld [vmem:[%s0 + $0x30] sm:$0xff]
    %v88 = vld [vmem:[%s0 + $0x38] sm:$0xff]
    %v89 = vld [vmem:[%s0 + $0x40] sm:$0xff]
    %v90 = vld [vmem:[%s0 + $0x48] sm:$0xff]
    %v91 = vld [vmem:[%s0 + $0x50] sm:$0xff]
    %v92 = vld [vmem:[%s0 + $0x58] sm:$0xff]
    %v93 = vld [vmem:[%s0 + $0x60] sm:$0xff]
    %v94 = vld [vmem:[%s0 + $0x68] sm:$0xff]
    %v95 = vld [vmem:[%s0 + $0x70] sm:$0xff]
    %v96 = vld [vmem:[%s0 + $0x78] sm:$0xff]
    %v97 = vpack.c.bf16 %v82, %v81
    %v98 = vpack.c.bf16 %v84, %v83
    %v99 = vpack.c.bf16 %v86, %v85
    %v100 = vpack.c.bf16 %v88, %v87
    %v101 = vpack.c.bf16 %v90, %v89
    %v102 = vpack.c.bf16 %v92, %v91
    %v103 = vpack.c.bf16 %v94, %v93
    %v104 = vpack.c.bf16 %v96, %v95
    %v105 = vld [vmem:[%s1] sm:$0xff]
    %v106 = vld [vmem:[%s1 + $0x8] sm:$0xff]
    %v107 = vld [vmem:[%s1 + $0x10] sm:$0xff]
    %v108 = vld [vmem:[%s1 + $0x18] sm:$0xff]
    %v109 = vld [vmem:[%s1 + $0x20] sm:$0xff]
    %v110 = vld [vmem:[%s1 + $0x28] sm:$0xff]
    %v111 = vld [vmem:[%s1 + $0x30] sm:$0xff]
    %v112 = vld [vmem:[%s1 + $0x38] sm:$0xff]
    %v113 = vld [vmem:[%s2] sm:$0x3]
    %v115 = vlaneseq
    %v116 = vshrl.u32 %v115, 7
    %v117 = vsub.s32 0, %v116
    %v118 = vrot.slane %v113, %v117
    %v119 = vlaneseq
    %v120 = vshrl.u32 %v119, 7
    %v121 = vsub.s32 1, %v120
    %v122 = vrot.slane %v113, %v121
    %v133 = vunpack.c.l.b16 %v105
    %v134 = vunpack.c.h.b16 %v105
    %v135 = vunpack.c.l.b16 %v106
    %v136 = vunpack.c.h.b16 %v106
    %v137 = vunpack.c.l.b16 %v107
    %v138 = vunpack.c.h.b16 %v107
    %v139 = vunpack.c.l.b16 %v108
    %v140 = vunpack.c.h.b16 %v108
    %v141 = vunpack.c.l.b16 %v109
    %v142 = vunpack.c.h.b16 %v109
    %v143 = vunpack.c.l.b16 %v110
    %v144 = vunpack.c.h.b16 %v110
    %v145 = vunpack.c.l.b16 %v111
    %v146 = vunpack.c.h.b16 %v111
    %v147 = vunpack.c.l.b16 %v112
    %v148 = vunpack.c.h.b16 %v112
    %v149 = vpack.c.b16 %v135, %v133
    %v150 = vpack.c.b16 %v136, %v134
    %v151 = vpack.c.b16 %v139, %v137
    %v152 = vpack.c.b16 %v140, %v138
    %v153 = vpack.c.b16 %v143, %v141
    %v154 = vpack.c.b16 %v144, %v142
    %v155 = vpack.c.b16 %v147, %v145
    %v156 = vpack.c.b16 %v148, %v146
    %vm165 = vcmask 523264
    %v167 = vsel %vm165, %v97, 0
    %v170 = vsel %vm165, %v98, 0
    %v173 = vsel %vm165, %v99, 0
    %v176 = vsel %vm165, %v100, 0
    %v179 = vsel %vm165, %v101, 0
    %v182 = vsel %vm165, %v102, 0
    %v185 = vsel %vm165, %v103, 0
    %v188 = vsel %vm165, %v104, 0
    %190 = vmatprep.subr.bf16.mxu0 %v150
    %191 = vmatpush1.bf16.msra.mxu0 %v149
    %192 = vmatprep.subr.bf16.mxu0 %v152
    %193 = vmatpush1.bf16.msra.mxu0 %v151
    %194 = vmatprep.subr.bf16.mxu0 %v154
    %195 = vmatpush1.bf16.msra.mxu0 %v153
    %196 = vmatprep.subr.bf16.mxu0 %v156
    %197 = vmatpush1.bf16.msra.mxu0 %v155
    %198 = vmatprep.subr.bf16.mxu0 0
    %199 = vmatpush1.bf16.msra.mxu0 0
    %200 = vmatprep.subr.bf16.mxu0 0
    %201 = vmatpush1.bf16.msra.mxu0 0
    %202 = vmatprep.subr.bf16.mxu0 0
    %203 = vmatpush1.bf16.msra.mxu0 0
    %204 = vmatprep.subr.bf16.mxu0 0
    %205 = vmatpush1.bf16.msra.mxu0 0
    %206 = vmatprep.subr.bf16.mxu0 0
    %207 = vmatpush1.bf16.msra.mxu0 0
    %208 = vmatprep.subr.bf16.mxu0 0
    %209 = vmatpush1.bf16.msra.mxu0 0
    %210 = vmatprep.subr.bf16.mxu0 0
    %211 = vmatpush1.bf16.msra.mxu0 0
    %212 = vmatprep.subr.bf16.mxu0 0
    %213 = vmatpush1.bf16.msra.mxu0 0
    %214 = vmatprep.subr.bf16.mxu0 0
    %215 = vmatpush1.bf16.msra.mxu0 0
    %216 = vmatprep.subr.bf16.mxu0 0
    %217 = vmatpush1.bf16.msra.mxu0 0
    %218 = vmatprep.subr.bf16.mxu0 0
    %219 = vmatpush1.bf16.msra.mxu0 0
    %220 = vmatprep.subr.bf16.mxu0 0
    %221 = vmatpush1.bf16.msra.mxu0 0
    %222 = vmatprep.mubr.bf16.mxu0 0
    %223 = vmatmul.mubr.bf16.gmra.mrb[0].mxu0 %v167
    %v224 = vpop.f32.mrb[0].mxu0
    %v225 = vadd.f32 %v118, %v224
    %v226 = vpop.f32.mrb[0].mxu0
    %v227 = vadd.f32 %v122, %v226
    %v228 = vpop.f32.mrb[0].mxu0
    %v229 = vadd.f32 %v118, %v228
    %v230 = vpop.f32.mrb[0].mxu0
    %v231 = vadd.f32 %v122, %v230
    %232 = vmatprep.mubr.bf16.mxu0 0
    %233 = vmatmul.mubr.bf16.gmra.mrb[0].mxu0 %v170
    %v234 = vpop.f32.mrb[0].mxu0
    %v235 = vadd.f32 %v118, %v234
    %v236 = vpop.f32.mrb[0].mxu0
    %v237 = vadd.f32 %v122, %v236
    %v238 = vpop.f32.mrb[0].mxu0
    %v239 = vadd.f32 %v118, %v238
    %v240 = vpop.f32.mrb[0].mxu0
    %v241 = vadd.f32 %v122, %v240
    %242 = vmatprep.mubr.bf16.mxu0 0
    %243 = vmatmul.mubr.bf16.gmra.mrb[0].mxu0 %v173
    %v244 = vpop.f32.mrb[0].mxu0
    %v245 = vadd.f32 %v118, %v244
    %v246 = vpop.f32.mrb[0].mxu0
    %v247 = vadd.f32 %v122, %v246
    %v248 = vpop.f32.mrb[0].mxu0
    %v249 = vadd.f32 %v118, %v248
    %v250 = vpop.f32.mrb[0].mxu0
    %v251 = vadd.f32 %v122, %v250
    %252 = vmatprep.mubr.bf16.mxu0 0
    %253 = vmatmul.mubr.bf16.gmra.mrb[0].mxu0 %v176
    %v254 = vpop.f32.mrb[0].mxu0
    %v255 = vadd.f32 %v118, %v254
    %v256 = vpop.f32.mrb[0].mxu0
    %v257 = vadd.f32 %v122, %v256
    %v258 = vpop.f32.mrb[0].mxu0
    %v259 = vadd.f32 %v118, %v258
    %v260 = vpop.f32.mrb[0].mxu0
    %v261 = vadd.f32 %v122, %v260
    %262 = vmatprep.mubr.bf16.mxu0 0
    %263 = vmatmul.mubr.bf16.gmra.mrb[0].mxu0 %v179
    %v264 = vpop.f32.mrb[0].mxu0
    %v265 = vadd.f32 %v118, %v264
    %v266 = vpop.f32.mrb[0].mxu0
    %v267 = vadd.f32 %v122, %v266
    %v268 = vpop.f32.mrb[0].mxu0
    %v269 = vadd.f32 %v118, %v268
    %v270 = vpop.f32.mrb[0].mxu0
    %v271 = vadd.f32 %v122, %v270
    %272 = vmatprep.mubr.bf16.mxu0 0
    %273 = vmatmul.mubr.bf16.gmra.mrb[0].mxu0 %v182
    %v274 = vpop.f32.mrb[0].mxu0
    %v275 = vadd.f32 %v118, %v274
    %v276 = vpop.f32.mrb[0].mxu0
    %v277 = vadd.f32 %v122, %v276
    %v278 = vpop.f32.mrb[0].mxu0
    %v279 = vadd.f32 %v118, %v278
    %v280 = vpop.f32.mrb[0].mxu0
    %v281 = vadd.f32 %v122, %v280
    %282 = vmatprep.mubr.bf16.mxu0 0
    %283 = vmatmul.mubr.bf16.gmra.mrb[0].mxu0 %v185
    %v284 = vpop.f32.mrb[0].mxu0
    %v285 = vadd.f32 %v118, %v284
    %v286 = vpop.f32.mrb[0].mxu0
    %v287 = vadd.f32 %v122, %v286
    %v288 = vpop.f32.mrb[0].mxu0
    %v289 = vadd.f32 %v118, %v288
    %v290 = vpop.f32.mrb[0].mxu0
    %v291 = vadd.f32 %v122, %v290
    %292 = vmatprep.mubr.bf16.mxu0 0
    %293 = vmatmul.mubr.bf16.gmra.mrb[0].mxu0 %v188
    %v294 = vpop.f32.mrb[0].mxu0
    %v295 = vadd.f32 %v118, %v294
    %v296 = vpop.f32.mrb[0].mxu0
    %v297 = vadd.f32 %v122, %v296
    %v298 = vpop.f32.mrb[0].mxu0
    %v299 = vadd.f32 %v118, %v298
    %v300 = vpop.f32.mrb[0].mxu0
    %v301 = vadd.f32 %v122, %v300
    %302 = vdwg.mxu0
    %v303 = vmax.f32 %v225, 0.0
    %v304 = vmax.f32 %v227, 0.0
    %v305 = vmax.f32 %v229, 0.0
    %v306 = vmax.f32 %v231, 0.0
    %v307 = vmax.f32 %v235, 0.0
    %v308 = vmax.f32 %v237, 0.0
    %v309 = vmax.f32 %v239, 0.0
    %v310 = vmax.f32 %v241, 0.0
    %v311 = vmax.f32 %v245, 0.0
    %v312 = vmax.f32 %v247, 0.0
    %v313 = vmax.f32 %v249, 0.0
    %v314 = vmax.f32 %v251, 0.0
    %v315 = vmax.f32 %v255, 0.0
    %v316 = vmax.f32 %v257, 0.0
    %v317 = vmax.f32 %v259, 0.0
    %v318 = vmax.f32 %v261, 0.0
    %v319 = vmax.f32 %v265, 0.0
    %v320 = vmax.f32 %v267, 0.0
    %v321 = vmax.f32 %v269, 0.0
    %v322 = vmax.f32 %v271, 0.0
    %v323 = vmax.f32 %v275, 0.0
    %v324 = vmax.f32 %v277, 0.0
    %v325 = vmax.f32 %v279, 0.0
    %v326 = vmax.f32 %v281, 0.0
    %v327 = vmax.f32 %v285, 0.0
    %v328 = vmax.f32 %v287, 0.0
    %v329 = vmax.f32 %v289, 0.0
    %v330 = vmax.f32 %v291, 0.0
    %v331 = vmax.f32 %v295, 0.0
    %v332 = vmax.f32 %v297, 0.0
    %v333 = vmax.f32 %v299, 0.0
    %v334 = vmax.f32 %v301, 0.0
    %v335 = vpack.c.bf16 %v305, %v303
    %v336 = vpack.c.bf16 %v306, %v304
    %v337 = vpack.c.bf16 %v309, %v307
    %v338 = vpack.c.bf16 %v310, %v308
    %v339 = vpack.c.bf16 %v313, %v311
    %v340 = vpack.c.bf16 %v314, %v312
    %v341 = vpack.c.bf16 %v317, %v315
    %v342 = vpack.c.bf16 %v318, %v316
    %v343 = vpack.c.bf16 %v321, %v319
    %v344 = vpack.c.bf16 %v322, %v320
    %v345 = vpack.c.bf16 %v325, %v323
    %v346 = vpack.c.bf16 %v326, %v324
    %v347 = vpack.c.bf16 %v329, %v327
    %v348 = vpack.c.bf16 %v330, %v328
    %v349 = vpack.c.bf16 %v333, %v331
    %v350 = vpack.c.bf16 %v334, %v332
    %v351 = vld [vmem:[#allocation2] sm:$0xff]
    %v352 = vld [vmem:[#allocation2 + $0x8] sm:$0xff]
    %v353 = vld [vmem:[#allocation2 + $0x10] sm:$0xff]
    %v354 = vld [vmem:[#allocation2 + $0x18] sm:$0xff]
    %v355 = vld [vmem:[#allocation2 + $0x20] sm:$0xff]
    %v356 = vld [vmem:[#allocation2 + $0x28] sm:$0xff]
    %v357 = vld [vmem:[#allocation2 + $0x30] sm:$0xff]
    %v358 = vld [vmem:[#allocation2 + $0x38] sm:$0xff]
    %v359 = vld [vmem:[#allocation2 + $0x40] sm:$0xff]
    %v360 = vld [vmem:[#allocation2 + $0x48] sm:$0xff]
    %v361 = vld [vmem:[#allocation2 + $0x50] sm:$0xff]
    %v362 = vld [vmem:[#allocation2 + $0x58] sm:$0xff]
    %v363 = vld [vmem:[#allocation2 + $0x60] sm:$0xff]
    %v364 = vld [vmem:[#allocation2 + $0x68] sm:$0xff]
    %v365 = vld [vmem:[#allocation2 + $0x70] sm:$0xff]
    %v366 = vld [vmem:[#allocation2 + $0x78] sm:$0xff]
    %v367 = vld [vmem:[#allocation2 + $0x80] sm:$0xff]
    %v368 = vld [vmem:[#allocation2 + $0x88] sm:$0xff]
    %v369 = vld [vmem:[#allocation2 + $0x90] sm:$0xff]
    %v370 = vld [vmem:[#allocation2 + $0x98] sm:$0xff]
    %v371 = vld [vmem:[#allocation2 + $0xa0] sm:$0xff]
    %v372 = vld [vmem:[#allocation2 + $0xa8] sm:$0xff]
    %v373 = vld [vmem:[#allocation2 + $0xb0] sm:$0xff]
    %v374 = vld [vmem:[#allocation2 + $0xb8] sm:$0xff]
    %v375 = vld [vmem:[#allocation2 + $0xc0] sm:$0xff]
    %v376 = vld [vmem:[#allocation2 + $0xc8] sm:$0xff]
    %v377 = vld [vmem:[#allocation2 + $0xd0] sm:$0xff]
    %v378 = vld [vmem:[#allocation2 + $0xd8] sm:$0xff]
    %v379 = vld [vmem:[#allocation2 + $0xe0] sm:$0xff]
    %v380 = vld [vmem:[#allocation2 + $0xe8] sm:$0xff]
    %v381 = vld [vmem:[#allocation2 + $0xf0] sm:$0xff]
    %v382 = vld [vmem:[#allocation2 + $0xf8] sm:$0xff]
    %v383 = vld [vmem:[#allocation2 + $0x100] sm:$0xff]
    %v384 = vld [vmem:[#allocation2 + $0x108] sm:$0xff]
    %v385 = vld [vmem:[#allocation2 + $0x110] sm:$0xff]
    %v386 = vld [vmem:[#allocation2 + $0x118] sm:$0xff]
    %v387 = vld [vmem:[#allocation2 + $0x120] sm:$0xff]
    %v388 = vld [vmem:[#allocation2 + $0x128] sm:$0xff]
    %v389 = vld [vmem:[#allocation2 + $0x130] sm:$0xff]
    %v390 = vld [vmem:[#allocation2 + $0x138] sm:$0xff]
    %v391 = vld [vmem:[#allocation2 + $0x140] sm:$0xff]
    %v392 = vld [vmem:[#allocation2 + $0x148] sm:$0xff]
    %v393 = vld [vmem:[#allocation2 + $0x150] sm:$0xff]
    %v394 = vld [vmem:[#allocation2 + $0x158] sm:$0xff]
    %v395 = vld [vmem:[#allocation2 + $0x160] sm:$0xff]
    %v396 = vld [vmem:[#allocation2 + $0x168] sm:$0xff]
    %v397 = vld [vmem:[#allocation2 + $0x170] sm:$0xff]
    %v398 = vld [vmem:[#allocation2 + $0x178] sm:$0xff]
    %v399 = vld [vmem:[#allocation2 + $0x180] sm:$0xff]
    %v400 = vld [vmem:[#allocation2 + $0x188] sm:$0xff]
    %v401 = vld [vmem:[#allocation2 + $0x190] sm:$0xff]
    %v402 = vld [vmem:[#allocation2 + $0x198] sm:$0xff]
    %v403 = vld [vmem:[#allocation2 + $0x1a0] sm:$0xff]
    %v404 = vld [vmem:[#allocation2 + $0x1a8] sm:$0xff]
    %v405 = vld [vmem:[#allocation2 + $0x1b0] sm:$0xff]
    %v406 = vld [vmem:[#allocation2 + $0x1b8] sm:$0xff]
    %v407 = vld [vmem:[#allocation2 + $0x1c0] sm:$0xff]
    %v408 = vld [vmem:[#allocation2 + $0x1c8] sm:$0xff]
    %v409 = vld [vmem:[#allocation2 + $0x1d0] sm:$0xff]
    %v410 = vld [vmem:[#allocation2 + $0x1d8] sm:$0xff]
    %v411 = vld [vmem:[#allocation2 + $0x1e0] sm:$0xff]
    %v412 = vld [vmem:[#allocation2 + $0x1e8] sm:$0xff]
    %v413 = vld [vmem:[#allocation2 + $0x1f0] sm:$0xff]
    %v414 = vld [vmem:[#allocation2 + $0x1f8] sm:$0xff]
    %v415 = vld [vmem:[%s4] sm:$0xf]
    %v417 = vlaneseq
    %v418 = vshrl.u32 %v417, 7
    %v419 = vsub.s32 0, %v418
    %v420 = vrot.slane %v415, %v419
    %v421 = vlaneseq
    %v422 = vshrl.u32 %v421, 7
    %v423 = vsub.s32 1, %v422
    %v424 = vrot.slane %v415, %v423
    %v425 = vlaneseq
    %v426 = vshrl.u32 %v425, 7
    %v427 = vsub.s32 2, %v426
    %v428 = vrot.slane %v415, %v427
    %v429 = vlaneseq
    %v430 = vshrl.u32 %v429, 7
    %v431 = vsub.s32 3, %v430
    %v432 = vrot.slane %v415, %v431
    %v501 = vunpack.c.l.b16 %v351
    %v502 = vunpack.c.h.b16 %v351
    %v503 = vunpack.c.l.b16 %v352
    %v504 = vunpack.c.h.b16 %v352
    %v505 = vunpack.c.l.b16 %v353
    %v506 = vunpack.c.h.b16 %v353
    %v507 = vunpack.c.l.b16 %v354
    %v508 = vunpack.c.h.b16 %v354
    %v509 = vunpack.c.l.b16 %v355
    %v510 = vunpack.c.h.b16 %v355
    %v511 = vunpack.c.l.b16 %v356
    %v512 = vunpack.c.h.b16 %v356
    %v513 = vunpack.c.l.b16 %v357
    %v514 = vunpack.c.h.b16 %v357
    %v515 = vunpack.c.l.b16 %v358
    %v516 = vunpack.c.h.b16 %v358
    %v517 = vunpack.c.l.b16 %v359
    %v518 = vunpack.c.h.b16 %v359
    %v519 = vunpack.c.l.b16 %v360
    %v520 = vunpack.c.h.b16 %v360
    %v521 = vunpack.c.l.b16 %v361
    %v522 = vunpack.c.h.b16 %v361
    %v523 = vunpack.c.l.b16 %v362
    %v524 = vunpack.c.h.b16 %v362
    %v525 = vunpack.c.l.b16 %v363
    %v526 = vunpack.c.h.b16 %v363
    %v527 = vunpack.c.l.b16 %v364
    %v528 = vunpack.c.h.b16 %v364
    %v529 = vunpack.c.l.b16 %v365
    %v530 = vunpack.c.h.b16 %v365
    %v531 = vunpack.c.l.b16 %v366
    %v532 = vunpack.c.h.b16 %v366
    %v533 = vunpack.c.l.b16 %v367
    %v534 = vunpack.c.h.b16 %v367
    %v535 = vunpack.c.l.b16 %v368
    %v536 = vunpack.c.h.b16 %v368
    %v537 = vunpack.c.l.b16 %v369
    %v538 = vunpack.c.h.b16 %v369
    %v539 = vunpack.c.l.b16 %v370
    %v540 = vunpack.c.h.b16 %v370
    %v541 = vunpack.c.l.b16 %v371
    %v542 = vunpack.c.h.b16 %v371
    %v543 = vunpack.c.l.b16 %v372
    %v544 = vunpack.c.h.b16 %v372
    %v545 = vunpack.c.l.b16 %v373
    %v546 = vunpack.c.h.b16 %v373
    %v547 = vunpack.c.l.b16 %v374
    %v548 = vunpack.c.h.b16 %v374
    %v549 = vunpack.c.l.b16 %v375
    %v550 = vunpack.c.h.b16 %v375
    %v551 = vunpack.c.l.b16 %v376
    %v552 = vunpack.c.h.b16 %v376
    %v553 = vunpack.c.l.b16 %v377
    %v554 = vunpack.c.h.b16 %v377
    %v555 = vunpack.c.l.b16 %v378
    %v556 = vunpack.c.h.b16 %v378
    %v557 = vunpack.c.l.b16 %v379
    %v558 = vunpack.c.h.b16 %v379
    %v559 = vunpack.c.l.b16 %v380
    %v560 = vunpack.c.h.b16 %v380
    %v561 = vunpack.c.l.b16 %v381
    %v562 = vunpack.c.h.b16 %v381
    %v563 = vunpack.c.l.b16 %v382
    %v564 = vunpack.c.h.b16 %v382
    %v565 = vunpack.c.l.b16 %v383
    %v566 = vunpack.c.h.b16 %v383
    %v567 = vunpack.c.l.b16 %v384
    %v568 = vunpack.c.h.b16 %v384
    %v569 = vunpack.c.l.b16 %v385
    %v570 = vunpack.c.h.b16 %v385
    %v571 = vunpack.c.l.b16 %v386
    %v572 = vunpack.c.h.b16 %v386
    %v573 = vunpack.c.l.b16 %v387
    %v574 = vunpack.c.h.b16 %v387
    %v575 = vunpack.c.l.b16 %v388
    %v576 = vunpack.c.h.b16 %v388
    %v577 = vunpack.c.l.b16 %v389
    %v578 = vunpack.c.h.b16 %v389
    %v579 = vunpack.c.l.b16 %v390
    %v580 = vunpack.c.h.b16 %v390
    %v581 = vunpack.c.l.b16 %v391
    %v582 = vunpack.c.h.b16 %v391
    %v583 = vunpack.c.l.b16 %v392
    %v584 = vunpack.c.h.b16 %v392
    %v585 = vunpack.c.l.b16 %v393
    %v586 = vunpack.c.h.b16 %v393
    %v587 = vunpack.c.l.b16 %v394
    %v588 = vunpack.c.h.b16 %v394
    %v589 = vunpack.c.l.b16 %v395
    %v590 = vunpack.c.h.b16 %v395
    %v591 = vunpack.c.l.b16 %v396
    %v592 = vunpack.c.h.b16 %v396
    %v593 = vunpack.c.l.b16 %v397
    %v594 = vunpack.c.h.b16 %v397
    %v595 = vunpack.c.l.b16 %v398
    %v596 = vunpack.c.h.b16 %v398
    %v597 = vunpack.c.l.b16 %v399
    %v598 = vunpack.c.h.b16 %v399
    %v599 = vunpack.c.l.b16 %v400
    %v600 = vunpack.c.h.b16 %v400
    %v601 = vunpack.c.l.b16 %v401
    %v602 = vunpack.c.h.b16 %v401
    %v603 = vunpack.c.l.b16 %v402
    %v604 = vunpack.c.h.b16 %v402
    %v605 = vunpack.c.l.b16 %v403
    %v606 = vunpack.c.h.b16 %v403
    %v607 = vunpack.c.l.b16 %v404
    %v608 = vunpack.c.h.b16 %v404
    %v609 = vunpack.c.l.b16 %v405
    %v610 = vunpack.c.h.b16 %v405
    %v611 = vunpack.c.l.b16 %v406
    %v612 = vunpack.c.h.b16 %v406
    %v613 = vunpack.c.l.b16 %v407
    %v614 = vunpack.c.h.b16 %v407
    %v615 = vunpack.c.l.b16 %v408
    %v616 = vunpack.c.h.b16 %v408
    %v617 = vunpack.c.l.b16 %v409
    %v618 = vunpack.c.h.b16 %v409
    %v619 = vunpack.c.l.b16 %v410
    %v620 = vunpack.c.h.b16 %v410
    %v621 = vunpack.c.l.b16 %v411
    %v622 = vunpack.c.h.b16 %v411
    %v623 = vunpack.c.l.b16 %v412
    %v624 = vunpack.c.h.b16 %v412
    %v625 = vunpack.c.l.b16 %v413
    %v626 = vunpack.c.h.b16 %v413
    %v627 = vunpack.c.l.b16 %v414
    %v628 = vunpack.c.h.b16 %v414
    %v629 = vpack.c.b16 %v505, %v501
    %v630 = vpack.c.b16 %v506, %v502
    %v631 = vpack.c.b16 %v507, %v503
    %v632 = vpack.c.b16 %v508, %v504
    %v633 = vpack.c.b16 %v513, %v509
    %v634 = vpack.c.b16 %v514, %v510
    %v635 = vpack.c.b16 %v515, %v511
    %v636 = vpack.c.b16 %v516, %v512
    %v637 = vpack.c.b16 %v521, %v517
    %v638 = vpack.c.b16 %v522, %v518
    %v639 = vpack.c.b16 %v523, %v519
    %v640 = vpack.c.b16 %v524, %v520
    %v641 = vpack.c.b16 %v529, %v525
    %v642 = vpack.c.b16 %v530, %v526
    %v643 = vpack.c.b16 %v531, %v527
    %v644 = vpack.c.b16 %v532, %v528
    %v645 = vpack.c.b16 %v537, %v533
    %v646 = vpack.c.b16 %v538, %v534
    %v647 = vpack.c.b16 %v539, %v535
    %v648 = vpack.c.b16 %v540, %v536
    %v649 = vpack.c.b16 %v545, %v541
    %v650 = vpack.c.b16 %v546, %v542
    %v651 = vpack.c.b16 %v547, %v543
    %v652 = vpack.c.b16 %v548, %v544
    %v653 = vpack.c.b16 %v553, %v549
    %v654 = vpack.c.b16 %v554, %v550
    %v655 = vpack.c.b16 %v555, %v551
    %v656 = vpack.c.b16 %v556, %v552
    %v657 = vpack.c.b16 %v561, %v557
    %v658 = vpack.c.b16 %v562, %v558
    %v659 = vpack.c.b16 %v563, %v559
    %v660 = vpack.c.b16 %v564, %v560
    %v661 = vpack.c.b16 %v569, %v565
    %v662 = vpack.c.b16 %v570, %v566
    %v663 = vpack.c.b16 %v571, %v567
    %v664 = vpack.c.b16 %v572, %v568
    %v665 = vpack.c.b16 %v577, %v573
    %v666 = vpack.c.b16 %v578, %v574
    %v667 = vpack.c.b16 %v579, %v575
    %v668 = vpack.c.b16 %v580, %v576
    %v669 = vpack.c.b16 %v585, %v581
    %v670 = vpack.c.b16 %v586, %v582
    %v671 = vpack.c.b16 %v587, %v583
    %v672 = vpack.c.b16 %v588, %v584
    %v673 = vpack.c.b16 %v593, %v589
    %v674 = vpack.c.b16 %v594, %v590
    %v675 = vpack.c.b16 %v595, %v591
    %v676 = vpack.c.b16 %v596, %v592
    %v677 = vpack.c.b16 %v601, %v597
    %v678 = vpack.c.b16 %v602, %v598
    %v679 = vpack.c.b16 %v603, %v599
    %v680 = vpack.c.b16 %v604, %v600
    %v681 = vpack.c.b16 %v609, %v605
    %v682 = vpack.c.b16 %v610, %v606
    %v683 = vpack.c.b16 %v611, %v607
    %v684 = vpack.c.b16 %v612, %v608
    %v685 = vpack.c.b16 %v617, %v613
    %v686 = vpack.c.b16 %v618, %v614
    %v687 = vpack.c.b16 %v619, %v615
    %v688 = vpack.c.b16 %v620, %v616
    %v689 = vpack.c.b16 %v625, %v621
    %v690 = vpack.c.b16 %v626, %v622
    %v691 = vpack.c.b16 %v627, %v623
    %v692 = vpack.c.b16 %v628, %v624
    %757 = vmatprep.subr.bf16.mxu0 %v630
    %758 = vmatpush1.bf16.msra.mxu0 %v629
    %759 = vmatprep.subr.bf16.mxu0 %v634
    %760 = vmatpush1.bf16.msra.mxu0 %v633
    %761 = vmatprep.subr.bf16.mxu0 %v638
    %762 = vmatpush1.bf16.msra.mxu0 %v637
    %763 = vmatprep.subr.bf16.mxu0 %v642
    %764 = vmatpush1.bf16.msra.mxu0 %v641
    %765 = vmatprep.subr.bf16.mxu0 %v646
    %766 = vmatpush1.bf16.msra.mxu0 %v645
    %767 = vmatprep.subr.bf16.mxu0 %v650
    %768 = vmatpush1.bf16.msra.mxu0 %v649
    %769 = vmatprep.subr.bf16.mxu0 %v654
    %770 = vmatpush1.bf16.msra.mxu0 %v653
    %771 = vmatprep.subr.bf16.mxu0 %v658
    %772 = vmatpush1.bf16.msra.mxu0 %v657
    %773 = vmatprep.subr.bf16.mxu0 %v662
    %774 = vmatpush1.bf16.msra.mxu0 %v661
    %775 = vmatprep.subr.bf16.mxu0 %v666
    %776 = vmatpush1.bf16.msra.mxu0 %v665
    %777 = vmatprep.subr.bf16.mxu0 %v670
    %778 = vmatpush1.bf16.msra.mxu0 %v669
    %779 = vmatprep.subr.bf16.mxu0 %v674
    %780 = vmatpush1.bf16.msra.mxu0 %v673
    %781 = vmatprep.subr.bf16.mxu0 %v678
    %782 = vmatpush1.bf16.msra.mxu0 %v677
    %783 = vmatprep.subr.bf16.mxu0 %v682
    %784 = vmatpush1.bf16.msra.mxu0 %v681
    %785 = vmatprep.subr.bf16.mxu0 %v686
    %786 = vmatpush1.bf16.msra.mxu0 %v685
    %787 = vmatprep.subr.bf16.mxu0 %v690
    %788 = vmatpush1.bf16.msra.mxu0 %v689
    %789 = vmatprep.mubr.bf16.mxu0 %v336
    %790 = vmatmul.mubr.bf16.gmra.mrb[0].mxu0 %v335
    %v791 = vpop.f32.mrb[0].mxu0
    %v792 = vadd.f32 %v420, %v791
    %v793 = vpop.f32.mrb[0].mxu0
    %v794 = vadd.f32 %v424, %v793
    %v795 = vpop.f32.mrb[0].mxu0
    %v796 = vadd.f32 %v420, %v795
    %v797 = vpop.f32.mrb[0].mxu0
    %v798 = vadd.f32 %v424, %v797
    %799 = vmatprep.mubr.bf16.mxu0 %v338
    %800 = vmatmul.mubr.bf16.gmra.mrb[0].mxu0 %v337
    %v801 = vpop.f32.mrb[0].mxu0
    %v802 = vadd.f32 %v420, %v801
    %v803 = vpop.f32.mrb[0].mxu0
    %v804 = vadd.f32 %v424, %v803
    %v805 = vpop.f32.mrb[0].mxu0
    %v806 = vadd.f32 %v420, %v805
    %v807 = vpop.f32.mrb[0].mxu0
    %v808 = vadd.f32 %v424, %v807
    %809 = vmatprep.mubr.bf16.mxu0 %v340
    %810 = vmatmul.mubr.bf16.gmra.mrb[0].mxu0 %v339
    %v811 = vpop.f32.mrb[0].mxu0
    %v812 = vadd.f32 %v420, %v811
    %v813 = vpop.f32.mrb[0].mxu0
    %v814 = vadd.f32 %v424, %v813
    %v815 = vpop.f32.mrb[0].mxu0
    %v816 = vadd.f32 %v420, %v815
    %v817 = vpop.f32.mrb[0].mxu0
    %v818 = vadd.f32 %v424, %v817
    %819 = vmatprep.mubr.bf16.mxu0 %v342
    %820 = vmatmul.mubr.bf16.gmra.mrb[0].mxu0 %v341
    %v821 = vpop.f32.mrb[0].mxu0
    %v822 = vadd.f32 %v420, %v821
    %v823 = vpop.f32.mrb[0].mxu0
    %v824 = vadd.f32 %v424, %v823
    %v825 = vpop.f32.mrb[0].mxu0
    %v826 = vadd.f32 %v420, %v825
    %v827 = vpop.f32.mrb[0].mxu0
    %v828 = vadd.f32 %v424, %v827
    %829 = vmatprep.mubr.bf16.mxu0 %v344
    %830 = vmatmul.mubr.bf16.gmra.mrb[0].mxu0 %v343
    %v831 = vpop.f32.mrb[0].mxu0
    %v832 = vadd.f32 %v420, %v831
    %v833 = vpop.f32.mrb[0].mxu0
    %v834 = vadd.f32 %v424, %v833
    %v835 = vpop.f32.mrb[0].mxu0
    %v836 = vadd.f32 %v420, %v835
    %v837 = vpop.f32.mrb[0].mxu0
    %v838 = vadd.f32 %v424, %v837
    %839 = vmatprep.mubr.bf16.mxu0 %v346
    %840 = vmatmul.mubr.bf16.gmra.mrb[0].mxu0 %v345
    %v841 = vpop.f32.mrb[0].mxu0
    %v842 = vadd.f32 %v420, %v841
    %v843 = vpop.f32.mrb[0].mxu0
    %v844 = vadd.f32 %v424, %v843
    %v845 = vpop.f32.mrb[0].mxu0
    %v846 = vadd.f32 %v420, %v845
    %v847 = vpop.f32.mrb[0].mxu0
    %v848 = vadd.f32 %v424, %v847
    %849 = vmatprep.mubr.bf16.mxu0 %v348
    %850 = vmatmul.mubr.bf16.gmra.mrb[0].mxu0 %v347
    %v851 = vpop.f32.mrb[0].mxu0
    %v852 = vadd.f32 %v420, %v851
    %v853 = vpop.f32.mrb[0].mxu0
    %v854 = vadd.f32 %v424, %v853
    %v855 = vpop.f32.mrb[0].mxu0
    %v856 = vadd.f32 %v420, %v855
    %v857 = vpop.f32.mrb[0].mxu0
    %v858 = vadd.f32 %v424, %v857
    %859 = vmatprep.mubr.bf16.mxu0 %v350
    %860 = vmatmul.mubr.bf16.gmra.mrb[0].mxu0 %v349
    %v861 = vpop.f32.mrb[0].mxu0
    %v862 = vadd.f32 %v420, %v861
    %v863 = vpop.f32.mrb[0].mxu0
    %v864 = vadd.f32 %v424, %v863
    %v865 = vpop.f32.mrb[0].mxu0
    %v866 = vadd.f32 %v420, %v865
    %v867 = vpop.f32.mrb[0].mxu0
    %v868 = vadd.f32 %v424, %v867
    %869 = vdwg.mxu0
    %870 = vmatprep.subr.bf16.mxu0 %v632
    %871 = vmatpush1.bf16.msra.mxu0 %v631
    %872 = vmatprep.subr.bf16.mxu0 %v636
    %873 = vmatpush1.bf16.msra.mxu0 %v635
    %874 = vmatprep.subr.bf16.mxu0 %v640
    %875 = vmatpush1.bf16.msra.mxu0 %v639
    %876 = vmatprep.subr.bf16.mxu0 %v644
    %877 = vmatpush1.bf16.msra.mxu0 %v643
    %878 = vmatprep.subr.bf16.mxu0 %v648
    %879 = vmatpush1.bf16.msra.mxu0 %v647
    %880 = vmatprep.subr.bf16.mxu0 %v652
    %881 = vmatpush1.bf16.msra.mxu0 %v651
    %882 = vmatprep.subr.bf16.mxu0 %v656
    %883 = vmatpush1.bf16.msra.mxu0 %v655
    %884 = vmatprep.subr.bf16.mxu0 %v660
    %885 = vmatpush1.bf16.msra.mxu0 %v659
    %886 = vmatprep.subr.bf16.mxu0 %v664
    %887 = vmatpush1.bf16.msra.mxu0 %v663
    %888 = vmatprep.subr.bf16.mxu0 %v668
    %889 = vmatpush1.bf16.msra.mxu0 %v667
    %890 = vmatprep.subr.bf16.mxu0 %v672
    %891 = vmatpush1.bf16.msra.mxu0 %v671
    %892 = vmatprep.subr.bf16.mxu0 %v676
    %893 = vmatpush1.bf16.msra.mxu0 %v675
    %894 = vmatprep.subr.bf16.mxu0 %v680
    %895 = vmatpush1.bf16.msra.mxu0 %v679
    %896 = vmatprep.subr.bf16.mxu0 %v684
    %897 = vmatpush1.bf16.msra.mxu0 %v683
    %898 = vmatprep.subr.bf16.mxu0 %v688
    %899 = vmatpush1.bf16.msra.mxu0 %v687
    %900 = vmatprep.subr.bf16.mxu0 %v692
    %901 = vmatpush1.bf16.msra.mxu0 %v691
    %902 = vmatprep.mubr.bf16.mxu0 %v336
    %903 = vmatmul.mubr.bf16.gmra.mrb[0].mxu0 %v335
    %v904 = vpop.f32.mrb[0].mxu0
    %v905 = vadd.f32 %v428, %v904
    %v906 = vpop.f32.mrb[0].mxu0
    %v907 = vadd.f32 %v432, %v906
    %v908 = vpop.f32.mrb[0].mxu0
    %v909 = vadd.f32 %v428, %v908
    %v910 = vpop.f32.mrb[0].mxu0
    %v911 = vadd.f32 %v432, %v910
    %912 = vmatprep.mubr.bf16.mxu0 %v338
    %913 = vmatmul.mubr.bf16.gmra.mrb[0].mxu0 %v337
    %v914 = vpop.f32.mrb[0].mxu0
    %v915 = vadd.f32 %v428, %v914
    %v916 = vpop.f32.mrb[0].mxu0
    %v917 = vadd.f32 %v432, %v916
    %v918 = vpop.f32.mrb[0].mxu0
    %v919 = vadd.f32 %v428, %v918
    %v920 = vpop.f32.mrb[0].mxu0
    %v921 = vadd.f32 %v432, %v920
    %922 = vmatprep.mubr.bf16.mxu0 %v340
    %923 = vmatmul.mubr.bf16.gmra.mrb[0].mxu0 %v339
    %v924 = vpop.f32.mrb[0].mxu0
    %v925 = vadd.f32 %v428, %v924
    %v926 = vpop.f32.mrb[0].mxu0
    %v927 = vadd.f32 %v432, %v926
    %v928 = vpop.f32.mrb[0].mxu0
    %v929 = vadd.f32 %v428, %v928
    %v930 = vpop.f32.mrb[0].mxu0
    %v931 = vadd.f32 %v432, %v930
    %932 = vmatprep.mubr.bf16.mxu0 %v342
    %933 = vmatmul.mubr.bf16.gmra.mrb[0].mxu0 %v341
    %v934 = vpop.f32.mrb[0].mxu0
    %v935 = vadd.f32 %v428, %v934
    %v936 = vpop.f32.mrb[0].mxu0
    %v937 = vadd.f32 %v432, %v936
    %v938 = vpop.f32.mrb[0].mxu0
    %v939 = vadd.f32 %v428, %v938
    %v940 = vpop.f32.mrb[0].mxu0
    %v941 = vadd.f32 %v432, %v940
    %942 = vmatprep.mubr.bf16.mxu0 %v344
    %943 = vmatmul.mubr.bf16.gmra.mrb[0].mxu0 %v343
    %v944 = vpop.f32.mrb[0].mxu0
    %v945 = vadd.f32 %v428, %v944
    %v946 = vpop.f32.mrb[0].mxu0
    %v947 = vadd.f32 %v432, %v946
    %v948 = vpop.f32.mrb[0].mxu0
    %v949 = vadd.f32 %v428, %v948
    %v950 = vpop.f32.mrb[0].mxu0
    %v951 = vadd.f32 %v432, %v950
    %952 = vmatprep.mubr.bf16.mxu0 %v346
    %953 = vmatmul.mubr.bf16.gmra.mrb[0].mxu0 %v345
    %v954 = vpop.f32.mrb[0].mxu0
    %v955 = vadd.f32 %v428, %v954
    %v956 = vpop.f32.mrb[0].mxu0
    %v957 = vadd.f32 %v432, %v956
    %v958 = vpop.f32.mrb[0].mxu0
    %v959 = vadd.f32 %v428, %v958
    %v960 = vpop.f32.mrb[0].mxu0
    %v961 = vadd.f32 %v432, %v960
    %962 = vmatprep.mubr.bf16.mxu0 %v348
    %963 = vmatmul.mubr.bf16.gmra.mrb[0].mxu0 %v347
    %v964 = vpop.f32.mrb[0].mxu0
    %v965 = vadd.f32 %v428, %v964
    %v966 = vpop.f32.mrb[0].mxu0
    %v967 = vadd.f32 %v432, %v966
    %v968 = vpop.f32.mrb[0].mxu0
    %v969 = vadd.f32 %v428, %v968
    %v970 = vpop.f32.mrb[0].mxu0
    %v971 = vadd.f32 %v432, %v970
    %972 = vmatprep.mubr.bf16.mxu0 %v350
    %973 = vmatmul.mubr.bf16.gmra.mrb[0].mxu0 %v349
    %v974 = vpop.f32.mrb[0].mxu0
    %v975 = vadd.f32 %v428, %v974
    %v976 = vpop.f32.mrb[0].mxu0
    %v977 = vadd.f32 %v432, %v976
    %v978 = vpop.f32.mrb[0].mxu0
    %v979 = vadd.f32 %v428, %v978
    %v980 = vpop.f32.mrb[0].mxu0
    %v981 = vadd.f32 %v432, %v980
    %982 = vdwg.mxu0
    %v983 = vmax.f32 %v792, 0.0
    %v984 = vmax.f32 %v794, 0.0
    %v985 = vmax.f32 %v905, 0.0
    %v986 = vmax.f32 %v907, 0.0
    %v987 = vmax.f32 %v796, 0.0
    %v988 = vmax.f32 %v798, 0.0
    %v989 = vmax.f32 %v909, 0.0
    %v990 = vmax.f32 %v911, 0.0
    %v991 = vmax.f32 %v802, 0.0
    %v992 = vmax.f32 %v804, 0.0
    %v993 = vmax.f32 %v915, 0.0
    %v994 = vmax.f32 %v917, 0.0
    %v995 = vmax.f32 %v806, 0.0
    %v996 = vmax.f32 %v808, 0.0
    %v997 = vmax.f32 %v919, 0.0
    %v998 = vmax.f32 %v921, 0.0
    %v999 = vmax.f32 %v812, 0.0
    %v1000 = vmax.f32 %v814, 0.0
    %v1001 = vmax.f32 %v925, 0.0
    %v1002 = vmax.f32 %v927, 0.0
    %v1003 = vmax.f32 %v816, 0.0
    %v1004 = vmax.f32 %v818, 0.0
    %v1005 = vmax.f32 %v929, 0.0
    %v1006 = vmax.f32 %v931, 0.0
    %v1007 = vmax.f32 %v822, 0.0
    %v1008 = vmax.f32 %v824, 0.0
    %v1009 = vmax.f32 %v935, 0.0
    %v1010 = vmax.f32 %v937, 0.0
    %v1011 = vmax.f32 %v826, 0.0
    %v1012 = vmax.f32 %v828, 0.0
    %v1013 = vmax.f32 %v939, 0.0
    %v1014 = vmax.f32 %v941, 0.0
    %v1015 = vmax.f32 %v832, 0.0
    %v1016 = vmax.f32 %v834, 0.0
    %v1017 = vmax.f32 %v945, 0.0
    %v1018 = vmax.f32 %v947, 0.0
    %v1019 = vmax.f32 %v836, 0.0
    %v1020 = vmax.f32 %v838, 0.0
    %v1021 = vmax.f32 %v949, 0.0
    %v1022 = vmax.f32 %v951, 0.0
    %v1023 = vmax.f32 %v842, 0.0
    %v1024 = vmax.f32 %v844, 0.0
    %v1025 = vmax.f32 %v955, 0.0
    %v1026 = vmax.f32 %v957, 0.0
    %v1027 = vmax.f32 %v846, 0.0
    %v1028 = vmax.f32 %v848, 0.0
    %v1029 = vmax.f32 %v959, 0.0
    %v1030 = vmax.f32 %v961, 0.0
    %v1031 = vmax.f32 %v852, 0.0
    %v1032 = vmax.f32 %v854, 0.0
    %v1033 = vmax.f32 %v965, 0.0
    %v1034 = vmax.f32 %v967, 0.0
    %v1035 = vmax.f32 %v856, 0.0
    %v1036 = vmax.f32 %v858, 0.0
    %v1037 = vmax.f32 %v969, 0.0
    %v1038 = vmax.f32 %v971, 0.0
    %v1039 = vmax.f32 %v862, 0.0
    %v1040 = vmax.f32 %v864, 0.0
    %v1041 = vmax.f32 %v975, 0.0
    %v1042 = vmax.f32 %v977, 0.0
    %v1043 = vmax.f32 %v866, 0.0
    %v1044 = vmax.f32 %v868, 0.0
    %v1045 = vmax.f32 %v979, 0.0
    %v1046 = vmax.f32 %v981, 0.0
    %v1047 = vpack.c.bf16 %v987, %v983
    %v1048 = vpack.c.bf16 %v988, %v984
    %v1049 = vpack.c.bf16 %v989, %v985
    %v1050 = vpack.c.bf16 %v990, %v986
    %v1051 = vpack.c.bf16 %v995, %v991
    %v1052 = vpack.c.bf16 %v996, %v992
    %v1053 = vpack.c.bf16 %v997, %v993
    %v1054 = vpack.c.bf16 %v998, %v994
    %v1055 = vpack.c.bf16 %v1003, %v999
    %v1056 = vpack.c.bf16 %v1004, %v1000
    %v1057 = vpack.c.bf16 %v1005, %v1001
    %v1058 = vpack.c.bf16 %v1006, %v1002
    %v1059 = vpack.c.bf16 %v1011, %v1007
    %v1060 = vpack.c.bf16 %v1012, %v1008
    %v1061 = vpack.c.bf16 %v1013, %v1009
    %v1062 = vpack.c.bf16 %v1014, %v1010
    %v1063 = vpack.c.bf16 %v1019, %v1015
    %v1064 = vpack.c.bf16 %v1020, %v1016
    %v1065 = vpack.c.bf16 %v1021, %v1017
    %v1066 = vpack.c.bf16 %v1022, %v1018
    %v1067 = vpack.c.bf16 %v1027, %v1023
    %v1068 = vpack.c.bf16 %v1028, %v1024
    %v1069 = vpack.c.bf16 %v1029, %v1025
    %v1070 = vpack.c.bf16 %v1030, %v1026
    %v1071 = vpack.c.bf16 %v1035, %v1031
    %v1072 = vpack.c.bf16 %v1036, %v1032
    %v1073 = vpack.c.bf16 %v1037, %v1033
    %v1074 = vpack.c.bf16 %v1038, %v1034
    %v1075 = vpack.c.bf16 %v1043, %v1039
    %v1076 = vpack.c.bf16 %v1044, %v1040
    %v1077 = vpack.c.bf16 %v1045, %v1041
    %v1078 = vpack.c.bf16 %v1046, %v1042
    %v1079 = vld [vmem:[#allocation5] sm:$0xff]
    %v1080 = vld [vmem:[#allocation5 + $0x8] sm:$0xff]
    %v1081 = vld [vmem:[#allocation5 + $0x10] sm:$0xff]
    %v1082 = vld [vmem:[#allocation5 + $0x18] sm:$0xff]
    %v1083 = vld [vmem:[#allocation5 + $0x20] sm:$0xff]
    %v1084 = vld [vmem:[#allocation5 + $0x28] sm:$0xff]
    %v1085 = vld [vmem:[#allocation5 + $0x30] sm:$0xff]
    %v1086 = vld [vmem:[#allocation5 + $0x38] sm:$0xff]
    %v1087 = vld [vmem:[#allocation5 + $0x40] sm:$0xff]
    %v1088 = vld [vmem:[#allocation5 + $0x48] sm:$0xff]
    %v1089 = vld [vmem:[#allocation5 + $0x50] sm:$0xff]
    %v1090 = vld [vmem:[#allocation5 + $0x58] sm:$0xff]
    %v1091 = vld [vmem:[#allocation5 + $0x60] sm:$0xff]
    %v1092 = vld [vmem:[#allocation5 + $0x68] sm:$0xff]
    %v1093 = vld [vmem:[#allocation5 + $0x70] sm:$0xff]
    %v1094 = vld [vmem:[#allocation5 + $0x78] sm:$0xff]
    %v1095 = vld [vmem:[#allocation5 + $0x80] sm:$0xff]
    %v1096 = vld [vmem:[#allocation5 + $0x88] sm:$0xff]
    %v1097 = vld [vmem:[#allocation5 + $0x90] sm:$0xff]
    %v1098 = vld [vmem:[#allocation5 + $0x98] sm:$0xff]
    %v1099 = vld [vmem:[#allocation5 + $0xa0] sm:$0xff]
    %v1100 = vld [vmem:[#allocation5 + $0xa8] sm:$0xff]
    %v1101 = vld [vmem:[#allocation5 + $0xb0] sm:$0xff]
    %v1102 = vld [vmem:[#allocation5 + $0xb8] sm:$0xff]
    %v1103 = vld [vmem:[#allocation5 + $0xc0] sm:$0xff]
    %v1104 = vld [vmem:[#allocation5 + $0xc8] sm:$0xff]
    %v1105 = vld [vmem:[#allocation5 + $0xd0] sm:$0xff]
    %v1106 = vld [vmem:[#allocation5 + $0xd8] sm:$0xff]
    %v1107 = vld [vmem:[#allocation5 + $0xe0] sm:$0xff]
    %v1108 = vld [vmem:[#allocation5 + $0xe8] sm:$0xff]
    %v1109 = vld [vmem:[#allocation5 + $0xf0] sm:$0xff]
    %v1110 = vld [vmem:[#allocation5 + $0xf8] sm:$0xff]
    %v1111 = vld [vmem:[#allocation5 + $0x100] sm:$0xff]
    %v1112 = vld [vmem:[#allocation5 + $0x108] sm:$0xff]
    %v1113 = vld [vmem:[#allocation5 + $0x110] sm:$0xff]
    %v1114 = vld [vmem:[#allocation5 + $0x118] sm:$0xff]
    %v1115 = vld [vmem:[#allocation5 + $0x120] sm:$0xff]
    %v1116 = vld [vmem:[#allocation5 + $0x128] sm:$0xff]
    %v1117 = vld [vmem:[#allocation5 + $0x130] sm:$0xff]
    %v1118 = vld [vmem:[#allocation5 + $0x138] sm:$0xff]
    %v1119 = vld [vmem:[#allocation5 + $0x140] sm:$0xff]
    %v1120 = vld [vmem:[#allocation5 + $0x148] sm:$0xff]
    %v1121 = vld [vmem:[#allocation5 + $0x150] sm:$0xff]
    %v1122 = vld [vmem:[#allocation5 + $0x158] sm:$0xff]
    %v1123 = vld [vmem:[#allocation5 + $0x160] sm:$0xff]
    %v1124 = vld [vmem:[#allocation5 + $0x168] sm:$0xff]
    %v1125 = vld [vmem:[#allocation5 + $0x170] sm:$0xff]
    %v1126 = vld [vmem:[#allocation5 + $0x178] sm:$0xff]
    %v1127 = vld [vmem:[#allocation5 + $0x180] sm:$0xff]
    %v1128 = vld [vmem:[#allocation5 + $0x188] sm:$0xff]
    %v1129 = vld [vmem:[#allocation5 + $0x190] sm:$0xff]
    %v1130 = vld [vmem:[#allocation5 + $0x198] sm:$0xff]
    %v1131 = vld [vmem:[#allocation5 + $0x1a0] sm:$0xff]
    %v1132 = vld [vmem:[#allocation5 + $0x1a8] sm:$0xff]
    %v1133 = vld [vmem:[#allocation5 + $0x1b0] sm:$0xff]
    %v1134 = vld [vmem:[#allocation5 + $0x1b8] sm:$0xff]
    %v1135 = vld [vmem:[#allocation5 + $0x1c0] sm:$0xff]
    %v1136 = vld [vmem:[#allocation5 + $0x1c8] sm:$0xff]
    %v1137 = vld [vmem:[#allocation5 + $0x1d0] sm:$0xff]
    %v1138 = vld [vmem:[#allocation5 + $0x1d8] sm:$0xff]
    %v1139 = vld [vmem:[#allocation5 + $0x1e0] sm:$0xff]
    %v1140 = vld [vmem:[#allocation5 + $0x1e8] sm:$0xff]
    %v1141 = vld [vmem:[#allocation5 + $0x1f0] sm:$0xff]
    %v1142 = vld [vmem:[#allocation5 + $0x1f8] sm:$0xff]
    %v1143 = vld [vmem:[%s6] sm:$0x3]
    %v1145 = vlaneseq
    %v1146 = vshrl.u32 %v1145, 7
    %v1147 = vsub.s32 0, %v1146
    %v1148 = vrot.slane %v1143, %v1147
    %v1149 = vlaneseq
    %v1150 = vshrl.u32 %v1149, 7
    %v1151 = vsub.s32 1, %v1150
    %v1152 = vrot.slane %v1143, %v1151
    %v1219 = vunpack.c.l.b16 %v1079
    %v1220 = vunpack.c.h.b16 %v1079
    %v1221 = vunpack.c.l.b16 %v1080
    %v1222 = vunpack.c.h.b16 %v1080
    %v1223 = vunpack.c.l.b16 %v1081
    %v1224 = vunpack.c.h.b16 %v1081
    %v1225 = vunpack.c.l.b16 %v1082
    %v1226 = vunpack.c.h.b16 %v1082
    %v1227 = vunpack.c.l.b16 %v1083
    %v1228 = vunpack.c.h.b16 %v1083
    %v1229 = vunpack.c.l.b16 %v1084
    %v1230 = vunpack.c.h.b16 %v1084
    %v1231 = vunpack.c.l.b16 %v1085
    %v1232 = vunpack.c.h.b16 %v1085
    %v1233 = vunpack.c.l.b16 %v1086
    %v1234 = vunpack.c.h.b16 %v1086
    %v1235 = vunpack.c.l.b16 %v1087
    %v1236 = vunpack.c.h.b16 %v1087
    %v1237 = vunpack.c.l.b16 %v1088
    %v1238 = vunpack.c.h.b16 %v1088
    %v1239 = vunpack.c.l.b16 %v1089
    %v1240 = vunpack.c.h.b16 %v1089
    %v1241 = vunpack.c.l.b16 %v1090
    %v1242 = vunpack.c.h.b16 %v1090
    %v1243 = vunpack.c.l.b16 %v1091
    %v1244 = vunpack.c.h.b16 %v1091
    %v1245 = vunpack.c.l.b16 %v1092
    %v1246 = vunpack.c.h.b16 %v1092
    %v1247 = vunpack.c.l.b16 %v1093
    %v1248 = vunpack.c.h.b16 %v1093
    %v1249 = vunpack.c.l.b16 %v1094
    %v1250 = vunpack.c.h.b16 %v1094
    %v1251 = vunpack.c.l.b16 %v1095
    %v1252 = vunpack.c.h.b16 %v1095
    %v1253 = vunpack.c.l.b16 %v1096
    %v1254 = vunpack.c.h.b16 %v1096
    %v1255 = vunpack.c.l.b16 %v1097
    %v1256 = vunpack.c.h.b16 %v1097
    %v1257 = vunpack.c.l.b16 %v1098
    %v1258 = vunpack.c.h.b16 %v1098
    %v1259 = vunpack.c.l.b16 %v1099
    %v1260 = vunpack.c.h.b16 %v1099
    %v1261 = vunpack.c.l.b16 %v1100
    %v1262 = vunpack.c.h.b16 %v1100
    %v1263 = vunpack.c.l.b16 %v1101
    %v1264 = vunpack.c.h.b16 %v1101
    %v1265 = vunpack.c.l.b16 %v1102
    %v1266 = vunpack.c.h.b16 %v1102
    %v1267 = vunpack.c.l.b16 %v1103
    %v1268 = vunpack.c.h.b16 %v1103
    %v1269 = vunpack.c.l.b16 %v1104
    %v1270 = vunpack.c.h.b16 %v1104
    %v1271 = vunpack.c.l.b16 %v1105
    %v1272 = vunpack.c.h.b16 %v1105
    %v1273 = vunpack.c.l.b16 %v1106
    %v1274 = vunpack.c.h.b16 %v1106
    %v1275 = vunpack.c.l.b16 %v1107
    %v1276 = vunpack.c.h.b16 %v1107
    %v1277 = vunpack.c.l.b16 %v1108
    %v1278 = vunpack.c.h.b16 %v1108
    %v1279 = vunpack.c.l.b16 %v1109
    %v1280 = vunpack.c.h.b16 %v1109
    %v1281 = vunpack.c.l.b16 %v1110
    %v1282 = vunpack.c.h.b16 %v1110
    %v1283 = vunpack.c.l.b16 %v1111
    %v1284 = vunpack.c.h.b16 %v1111
    %v1285 = vunpack.c.l.b16 %v1112
    %v1286 = vunpack.c.h.b16 %v1112
    %v1287 = vunpack.c.l.b16 %v1113
    %v1288 = vunpack.c.h.b16 %v1113
    %v1289 = vunpack.c.l.b16 %v1114
    %v1290 = vunpack.c.h.b16 %v1114
    %v1291 = vunpack.c.l.b16 %v1115
    %v1292 = vunpack.c.h.b16 %v1115
    %v1293 = vunpack.c.l.b16 %v1116
    %v1294 = vunpack.c.h.b16 %v1116
    %v1295 = vunpack.c.l.b16 %v1117
    %v1296 = vunpack.c.h.b16 %v1117
    %v1297 = vunpack.c.l.b16 %v1118
    %v1298 = vunpack.c.h.b16 %v1118
    %v1299 = vunpack.c.l.b16 %v1119
    %v1300 = vunpack.c.h.b16 %v1119
    %v1301 = vunpack.c.l.b16 %v1120
    %v1302 = vunpack.c.h.b16 %v1120
    %v1303 = vunpack.c.l.b16 %v1121
    %v1304 = vunpack.c.h.b16 %v1121
    %v1305 = vunpack.c.l.b16 %v1122
    %v1306 = vunpack.c.h.b16 %v1122
    %v1307 = vunpack.c.l.b16 %v1123
    %v1308 = vunpack.c.h.b16 %v1123
    %v1309 = vunpack.c.l.b16 %v1124
    %v1310 = vunpack.c.h.b16 %v1124
    %v1311 = vunpack.c.l.b16 %v1125
    %v1312 = vunpack.c.h.b16 %v1125
    %v1313 = vunpack.c.l.b16 %v1126
    %v1314 = vunpack.c.h.b16 %v1126
    %v1315 = vunpack.c.l.b16 %v1127
    %v1316 = vunpack.c.h.b16 %v1127
    %v1317 = vunpack.c.l.b16 %v1128
    %v1318 = vunpack.c.h.b16 %v1128
    %v1319 = vunpack.c.l.b16 %v1129
    %v1320 = vunpack.c.h.b16 %v1129
    %v1321 = vunpack.c.l.b16 %v1130
    %v1322 = vunpack.c.h.b16 %v1130
    %v1323 = vunpack.c.l.b16 %v1131
    %v1324 = vunpack.c.h.b16 %v1131
    %v1325 = vunpack.c.l.b16 %v1132
    %v1326 = vunpack.c.h.b16 %v1132
    %v1327 = vunpack.c.l.b16 %v1133
    %v1328 = vunpack.c.h.b16 %v1133
    %v1329 = vunpack.c.l.b16 %v1134
    %v1330 = vunpack.c.h.b16 %v1134
    %v1331 = vunpack.c.l.b16 %v1135
    %v1332 = vunpack.c.h.b16 %v1135
    %v1333 = vunpack.c.l.b16 %v1136
    %v1334 = vunpack.c.h.b16 %v1136
    %v1335 = vunpack.c.l.b16 %v1137
    %v1336 = vunpack.c.h.b16 %v1137
    %v1337 = vunpack.c.l.b16 %v1138
    %v1338 = vunpack.c.h.b16 %v1138
    %v1339 = vunpack.c.l.b16 %v1139
    %v1340 = vunpack.c.h.b16 %v1139
    %v1341 = vunpack.c.l.b16 %v1140
    %v1342 = vunpack.c.h.b16 %v1140
    %v1343 = vunpack.c.l.b16 %v1141
    %v1344 = vunpack.c.h.b16 %v1141
    %v1345 = vunpack.c.l.b16 %v1142
    %v1346 = vunpack.c.h.b16 %v1142
    %v1347 = vpack.c.b16 %v1221, %v1219
    %v1348 = vpack.c.b16 %v1222, %v1220
    %v1349 = vpack.c.b16 %v1225, %v1223
    %v1350 = vpack.c.b16 %v1226, %v1224
    %v1351 = vpack.c.b16 %v1229, %v1227
    %v1352 = vpack.c.b16 %v1230, %v1228
    %v1353 = vpack.c.b16 %v1233, %v1231
    %v1354 = vpack.c.b16 %v1234, %v1232
    %v1355 = vpack.c.b16 %v1237, %v1235
    %v1356 = vpack.c.b16 %v1238, %v1236
    %v1357 = vpack.c.b16 %v1241, %v1239
    %v1358 = vpack.c.b16 %v1242, %v1240
    %v1359 = vpack.c.b16 %v1245, %v1243
    %v1360 = vpack.c.b16 %v1246, %v1244
    %v1361 = vpack.c.b16 %v1249, %v1247
    %v1362 = vpack.c.b16 %v1250, %v1248
    %v1363 = vpack.c.b16 %v1253, %v1251
    %v1364 = vpack.c.b16 %v1254, %v1252
    %v1365 = vpack.c.b16 %v1257, %v1255
    %v1366 = vpack.c.b16 %v1258, %v1256
    %v1367 = vpack.c.b16 %v1261, %v1259
    %v1368 = vpack.c.b16 %v1262, %v1260
    %v1369 = vpack.c.b16 %v1265, %v1263
    %v1370 = vpack.c.b16 %v1266, %v1264
    %v1371 = vpack.c.b16 %v1269, %v1267
    %v1372 = vpack.c.b16 %v1270, %v1268
    %v1373 = vpack.c.b16 %v1273, %v1271
    %v1374 = vpack.c.b16 %v1274, %v1272
    %v1375 = vpack.c.b16 %v1277, %v1275
    %v1376 = vpack.c.b16 %v1278, %v1276
    %v1377 = vpack.c.b16 %v1281, %v1279
    %v1378 = vpack.c.b16 %v1282, %v1280
    %v1379 = vpack.c.b16 %v1285, %v1283
    %v1380 = vpack.c.b16 %v1286, %v1284
    %v1381 = vpack.c.b16 %v1289, %v1287
    %v1382 = vpack.c.b16 %v1290, %v1288
    %v1383 = vpack.c.b16 %v1293, %v1291
    %v1384 = vpack.c.b16 %v1294, %v1292
    %v1385 = vpack.c.b16 %v1297, %v1295
    %v1386 = vpack.c.b16 %v1298, %v1296
    %v1387 = vpack.c.b16 %v1301, %v1299
    %v1388 = vpack.c.b16 %v1302, %v1300
    %v1389 = vpack.c.b16 %v1305, %v1303
    %v1390 = vpack.c.b16 %v1306, %v1304
    %v1391 = vpack.c.b16 %v1309, %v1307
    %v1392 = vpack.c.b16 %v1310, %v1308
    %v1393 = vpack.c.b16 %v1313, %v1311
    %v1394 = vpack.c.b16 %v1314, %v1312
    %v1395 = vpack.c.b16 %v1317, %v1315
    %v1396 = vpack.c.b16 %v1318, %v1316
    %v1397 = vpack.c.b16 %v1321, %v1319
    %v1398 = vpack.c.b16 %v1322, %v1320
    %v1399 = vpack.c.b16 %v1325, %v1323
    %v1400 = vpack.c.b16 %v1326, %v1324
    %v1401 = vpack.c.b16 %v1329, %v1327
    %v1402 = vpack.c.b16 %v1330, %v1328
    %v1403 = vpack.c.b16 %v1333, %v1331
    %v1404 = vpack.c.b16 %v1334, %v1332
    %v1405 = vpack.c.b16 %v1337, %v1335
    %v1406 = vpack.c.b16 %v1338, %v1336
    %v1407 = vpack.c.b16 %v1341, %v1339
    %v1408 = vpack.c.b16 %v1342, %v1340
    %v1409 = vpack.c.b16 %v1345, %v1343
    %v1410 = vpack.c.b16 %v1346, %v1344
    %1475 = vmatprep.subr.bf16.mxu0 %v1348
    %1476 = vmatpush1.bf16.msra.mxu0 %v1347
    %1477 = vmatprep.subr.bf16.mxu0 %v1350
    %1478 = vmatpush1.bf16.msra.mxu0 %v1349
    %1479 = vmatprep.subr.bf16.mxu0 %v1352
    %1480 = vmatpush1.bf16.msra.mxu0 %v1351
    %1481 = vmatprep.subr.bf16.mxu0 %v1354
    %1482 = vmatpush1.bf16.msra.mxu0 %v1353
    %1483 = vmatprep.subr.bf16.mxu0 %v1356
    %1484 = vmatpush1.bf16.msra.mxu0 %v1355
    %1485 = vmatprep.subr.bf16.mxu0 %v1358
    %1486 = vmatpush1.bf16.msra.mxu0 %v1357
    %1487 = vmatprep.subr.bf16.mxu0 %v1360
    %1488 = vmatpush1.bf16.msra.mxu0 %v1359
    %1489 = vmatprep.subr.bf16.mxu0 %v1362
    %1490 = vmatpush1.bf16.msra.mxu0 %v1361
    %1491 = vmatprep.subr.bf16.mxu0 %v1364
    %1492 = vmatpush1.bf16.msra.mxu0 %v1363
    %1493 = vmatprep.subr.bf16.mxu0 %v1366
    %1494 = vmatpush1.bf16.msra.mxu0 %v1365
    %1495 = vmatprep.subr.bf16.mxu0 %v1368
    %1496 = vmatpush1.bf16.msra.mxu0 %v1367
    %1497 = vmatprep.subr.bf16.mxu0 %v1370
    %1498 = vmatpush1.bf16.msra.mxu0 %v1369
    %1499 = vmatprep.subr.bf16.mxu0 %v1372
    %1500 = vmatpush1.bf16.msra.mxu0 %v1371
    %1501 = vmatprep.subr.bf16.mxu0 %v1374
    %1502 = vmatpush1.bf16.msra.mxu0 %v1373
    %1503 = vmatprep.subr.bf16.mxu0 %v1376
    %1504 = vmatpush1.bf16.msra.mxu0 %v1375
    %1505 = vmatprep.subr.bf16.mxu0 %v1378
    %1506 = vmatpush1.bf16.msra.mxu0 %v1377
    %1507 = vmatprep.mubr.bf16.mxu0 %v1048
    %1508 = vmatmul.mubr.bf16.gmra.mrb[0].mxu0 %v1047
    %v1509 = vpop.f32.mrb[0].mxu0
    %v1510 = vadd.f32 %v1148, %v1509
    %v1511 = vpop.f32.mrb[0].mxu0
    %v1512 = vadd.f32 %v1152, %v1511
    %v1513 = vpop.f32.mrb[0].mxu0
    %v1514 = vadd.f32 %v1148, %v1513
    %v1515 = vpop.f32.mrb[0].mxu0
    %v1516 = vadd.f32 %v1152, %v1515
    %1517 = vmatprep.mubr.bf16.mxu0 %v1052
    %1518 = vmatmul.mubr.bf16.gmra.mrb[0].mxu0 %v1051
    %v1519 = vpop.f32.mrb[0].mxu0
    %v1520 = vadd.f32 %v1148, %v1519
    %v1521 = vpop.f32.mrb[0].mxu0
    %v1522 = vadd.f32 %v1152, %v1521
    %v1523 = vpop.f32.mrb[0].mxu0
    %v1524 = vadd.f32 %v1148, %v1523
    %v1525 = vpop.f32.mrb[0].mxu0
    %v1526 = vadd.f32 %v1152, %v1525
    %1527 = vmatprep.mubr.bf16.mxu0 %v1056
    %1528 = vmatmul.mubr.bf16.gmra.mrb[0].mxu0 %v1055
    %v1529 = vpop.f32.mrb[0].mxu0
    %v1530 = vadd.f32 %v1148, %v1529
    %v1531 = vpop.f32.mrb[0].mxu0
    %v1532 = vadd.f32 %v1152, %v1531
    %v1533 = vpop.f32.mrb[0].mxu0
    %v1534 = vadd.f32 %v1148, %v1533
    %v1535 = vpop.f32.mrb[0].mxu0
    %v1536 = vadd.f32 %v1152, %v1535
    %1537 = vmatprep.mubr.bf16.mxu0 %v1060
    %1538 = vmatmul.mubr.bf16.gmra.mrb[0].mxu0 %v1059
    %v1539 = vpop.f32.mrb[0].mxu0
    %v1540 = vadd.f32 %v1148, %v1539
    %v1541 = vpop.f32.mrb[0].mxu0
    %v1542 = vadd.f32 %v1152, %v1541
    %v1543 = vpop.f32.mrb[0].mxu0
    %v1544 = vadd.f32 %v1148, %v1543
    %v1545 = vpop.f32.mrb[0].mxu0
    %v1546 = vadd.f32 %v1152, %v1545
    %1547 = vmatprep.mubr.bf16.mxu0 %v1064
    %1548 = vmatmul.mubr.bf16.gmra.mrb[0].mxu0 %v1063
    %v1549 = vpop.f32.mrb[0].mxu0
    %v1550 = vadd.f32 %v1148, %v1549
    %v1551 = vpop.f32.mrb[0].mxu0
    %v1552 = vadd.f32 %v1152, %v1551
    %v1553 = vpop.f32.mrb[0].mxu0
    %v1554 = vadd.f32 %v1148, %v1553
    %v1555 = vpop.f32.mrb[0].mxu0
    %v1556 = vadd.f32 %v1152, %v1555
    %1557 = vmatprep.mubr.bf16.mxu0 %v1068
    %1558 = vmatmul.mubr.bf16.gmra.mrb[0].mxu0 %v1067
    %v1559 = vpop.f32.mrb[0].mxu0
    %v1560 = vadd.f32 %v1148, %v1559
    %v1561 = vpop.f32.mrb[0].mxu0
    %v1562 = vadd.f32 %v1152, %v1561
    %v1563 = vpop.f32.mrb[0].mxu0
    %v1564 = vadd.f32 %v1148, %v1563
    %v1565 = vpop.f32.mrb[0].mxu0
    %v1566 = vadd.f32 %v1152, %v1565
    %1567 = vmatprep.mubr.bf16.mxu0 %v1072
    %1568 = vmatmul.mubr.bf16.gmra.mrb[0].mxu0 %v1071
    %v1569 = vpop.f32.mrb[0].mxu0
    %v1570 = vadd.f32 %v1148, %v1569
    %v1571 = vpop.f32.mrb[0].mxu0
    %v1572 = vadd.f32 %v1152, %v1571
    %v1573 = vpop.f32.mrb[0].mxu0
    %v1574 = vadd.f32 %v1148, %v1573
    %v1575 = vpop.f32.mrb[0].mxu0
    %v1576 = vadd.f32 %v1152, %v1575
    %1577 = vmatprep.mubr.bf16.mxu0 %v1076
    %1578 = vmatmul.mubr.bf16.gmra.mrb[0].mxu0 %v1075
    %v1579 = vpop.f32.mrb[0].mxu0
    %v1580 = vadd.f32 %v1148, %v1579
    %v1581 = vpop.f32.mrb[0].mxu0
    %v1582 = vadd.f32 %v1152, %v1581
    %v1583 = vpop.f32.mrb[0].mxu0
    %v1584 = vadd.f32 %v1148, %v1583
    %v1585 = vpop.f32.mrb[0].mxu0
    %v1586 = vadd.f32 %v1152, %v1585
    %1587 = vdwg.mxu0
    %1588 = vmatprep.subr.bf16.mxu0 %v1380
    %1589 = vmatpush1.bf16.msra.mxu0 %v1379
    %1590 = vmatprep.subr.bf16.mxu0 %v1382
    %1591 = vmatpush1.bf16.msra.mxu0 %v1381
    %1592 = vmatprep.subr.bf16.mxu0 %v1384
    %1593 = vmatpush1.bf16.msra.mxu0 %v1383
    %1594 = vmatprep.subr.bf16.mxu0 %v1386
    %1595 = vmatpush1.bf16.msra.mxu0 %v1385
    %1596 = vmatprep.subr.bf16.mxu0 %v1388
    %1597 = vmatpush1.bf16.msra.mxu0 %v1387
    %1598 = vmatprep.subr.bf16.mxu0 %v1390
    %1599 = vmatpush1.bf16.msra.mxu0 %v1389
    %1600 = vmatprep.subr.bf16.mxu0 %v1392
    %1601 = vmatpush1.bf16.msra.mxu0 %v1391
    %1602 = vmatprep.subr.bf16.mxu0 %v1394
    %1603 = vmatpush1.bf16.msra.mxu0 %v1393
    %1604 = vmatprep.subr.bf16.mxu0 %v1396
    %1605 = vmatpush1.bf16.msra.mxu0 %v1395
    %1606 = vmatprep.subr.bf16.mxu0 %v1398
    %1607 = vmatpush1.bf16.msra.mxu0 %v1397
    %1608 = vmatprep.subr.bf16.mxu0 %v1400
    %1609 = vmatpush1.bf16.msra.mxu0 %v1399
    %1610 = vmatprep.subr.bf16.mxu0 %v1402
    %1611 = vmatpush1.bf16.msra.mxu0 %v1401
    %1612 = vmatprep.subr.bf16.mxu0 %v1404
    %1613 = vmatpush1.bf16.msra.mxu0 %v1403
    %1614 = vmatprep.subr.bf16.mxu0 %v1406
    %1615 = vmatpush1.bf16.msra.mxu0 %v1405
    %1616 = vmatprep.subr.bf16.mxu0 %v1408
    %1617 = vmatpush1.bf16.msra.mxu0 %v1407
    %1618 = vmatprep.subr.bf16.mxu0 %v1410
    %1619 = vmatpush1.bf16.msra.mxu0 %v1409
    %1620 = vmatprep.mubr.bf16.mxu0 %v1050
    %1621 = vmatmul.mubr.bf16.gmra.mrb[0].mxu0 %v1049
    %v1622 = vpop.f32.mrb[0].mxu0
    %v1623 = vadd.f32 %v1510, %v1622
    %v1624 = vpop.f32.mrb[0].mxu0
    %v1625 = vadd.f32 %v1512, %v1624
    %v1626 = vpop.f32.mrb[0].mxu0
    %v1627 = vadd.f32 %v1514, %v1626
    %v1628 = vpop.f32.mrb[0].mxu0
    %v1629 = vadd.f32 %v1516, %v1628
    %1630 = vmatprep.mubr.bf16.mxu0 %v1054
    %1631 = vmatmul.mubr.bf16.gmra.mrb[0].mxu0 %v1053
    %v1632 = vpop.f32.mrb[0].mxu0
    %v1633 = vadd.f32 %v1520, %v1632
    %v1634 = vpop.f32.mrb[0].mxu0
    %v1635 = vadd.f32 %v1522, %v1634
    %v1636 = vpop.f32.mrb[0].mxu0
    %v1637 = vadd.f32 %v1524, %v1636
    %v1638 = vpop.f32.mrb[0].mxu0
    %v1639 = vadd.f32 %v1526, %v1638
    %1640 = vmatprep.mubr.bf16.mxu0 %v1058
    %1641 = vmatmul.mubr.bf16.gmra.mrb[0].mxu0 %v1057
    %v1642 = vpop.f32.mrb[0].mxu0
    %v1643 = vadd.f32 %v1530, %v1642
    %v1644 = vpop.f32.mrb[0].mxu0
    %v1645 = vadd.f32 %v1532, %v1644
    %v1646 = vpop.f32.mrb[0].mxu0
    %v1647 = vadd.f32 %v1534, %v1646
    %v1648 = vpop.f32.mrb[0].mxu0
    %v1649 = vadd.f32 %v1536, %v1648
    %1650 = vmatprep.mubr.bf16.mxu0 %v1062
    %1651 = vmatmul.mubr.bf16.gmra.mrb[0].mxu0 %v1061
    %v1652 = vpop.f32.mrb[0].mxu0
    %v1653 = vadd.f32 %v1540, %v1652
    %v1654 = vpop.f32.mrb[0].mxu0
    %v1655 = vadd.f32 %v1542, %v1654
    %v1656 = vpop.f32.mrb[0].mxu0
    %v1657 = vadd.f32 %v1544, %v1656
    %v1658 = vpop.f32.mrb[0].mxu0
    %v1659 = vadd.f32 %v1546, %v1658
    %1660 = vmatprep.mubr.bf16.mxu0 %v1066
    %1661 = vmatmul.mubr.bf16.gmra.mrb[0].mxu0 %v1065
    %v1662 = vpop.f32.mrb[0].mxu0
    %v1663 = vadd.f32 %v1550, %v1662
    %v1664 = vpop.f32.mrb[0].mxu0
    %v1665 = vadd.f32 %v1552, %v1664
    %v1666 = vpop.f32.mrb[0].mxu0
    %v1667 = vadd.f32 %v1554, %v1666
    %v1668 = vpop.f32.mrb[0].mxu0
    %v1669 = vadd.f32 %v1556, %v1668
    %1670 = vmatprep.mubr.bf16.mxu0 %v1070
    %1671 = vmatmul.mubr.bf16.gmra.mrb[0].mxu0 %v1069
    %v1672 = vpop.f32.mrb[0].mxu0
    %v1673 = vadd.f32 %v1560, %v1672
    %v1674 = vpop.f32.mrb[0].mxu0
    %v1675 = vadd.f32 %v1562, %v1674
    %v1676 = vpop.f32.mrb[0].mxu0
    %v1677 = vadd.f32 %v1564, %v1676
    %v1678 = vpop.f32.mrb[0].mxu0
    %v1679 = vadd.f32 %v1566, %v1678
    %1680 = vmatprep.mubr.bf16.mxu0 %v1074
    %1681 = vmatmul.mubr.bf16.gmra.mrb[0].mxu0 %v1073
    %v1682 = vpop.f32.mrb[0].mxu0
    %v1683 = vadd.f32 %v1570, %v1682
    %v1684 = vpop.f32.mrb[0].mxu0
    %v1685 = vadd.f32 %v1572, %v1684
    %v1686 = vpop.f32.mrb[0].mxu0
    %v1687 = vadd.f32 %v1574, %v1686
    %v1688 = vpop.f32.mrb[0].mxu0
    %v1689 = vadd.f32 %v1576, %v1688
    %1690 = vmatprep.mubr.bf16.mxu0 %v1078
    %1691 = vmatmul.mubr.bf16.gmra.mrb[0].mxu0 %v1077
    %v1692 = vpop.f32.mrb[0].mxu0
    %v1693 = vadd.f32 %v1580, %v1692
    %v1694 = vpop.f32.mrb[0].mxu0
    %v1695 = vadd.f32 %v1582, %v1694
    %v1696 = vpop.f32.mrb[0].mxu0
    %v1697 = vadd.f32 %v1584, %v1696
    %v1698 = vpop.f32.mrb[0].mxu0
    %v1699 = vadd.f32 %v1586, %v1698
    %1700 = vdwg.mxu0
    %v1701 = vmax.f32 %v1623, 0.0
    %v1702 = vmax.f32 %v1625, 0.0
    %v1703 = vmax.f32 %v1627, 0.0
    %v1704 = vmax.f32 %v1629, 0.0
    %v1705 = vmax.f32 %v1633, 0.0
    %v1706 = vmax.f32 %v1635, 0.0
    %v1707 = vmax.f32 %v1637, 0.0
    %v1708 = vmax.f32 %v1639, 0.0
    %v1709 = vmax.f32 %v1643, 0.0
    %v1710 = vmax.f32 %v1645, 0.0
    %v1711 = vmax.f32 %v1647, 0.0
    %v1712 = vmax.f32 %v1649, 0.0
    %v1713 = vmax.f32 %v1653, 0.0
    %v1714 = vmax.f32 %v1655, 0.0
    %v1715 = vmax.f32 %v1657, 0.0
    %v1716 = vmax.f32 %v1659, 0.0
    %v1717 = vmax.f32 %v1663, 0.0
    %v1718 = vmax.f32 %v1665, 0.0
    %v1719 = vmax.f32 %v1667, 0.0
    %v1720 = vmax.f32 %v1669, 0.0
    %v1721 = vmax.f32 %v1673, 0.0
    %v1722 = vmax.f32 %v1675, 0.0
    %v1723 = vmax.f32 %v1677, 0.0
    %v1724 = vmax.f32 %v1679, 0.0
    %v1725 = vmax.f32 %v1683, 0.0
    %v1726 = vmax.f32 %v1685, 0.0
    %v1727 = vmax.f32 %v1687, 0.0
    %v1728 = vmax.f32 %v1689, 0.0
    %v1729 = vmax.f32 %v1693, 0.0
    %v1730 = vmax.f32 %v1695, 0.0
    %v1731 = vmax.f32 %v1697, 0.0
    %v1732 = vmax.f32 %v1699, 0.0
    %v1733 = vpack.c.bf16 %v1703, %v1701
    %v1734 = vpack.c.bf16 %v1704, %v1702
    %v1735 = vpack.c.bf16 %v1707, %v1705
    %v1736 = vpack.c.bf16 %v1708, %v1706
    %v1737 = vpack.c.bf16 %v1711, %v1709
    %v1738 = vpack.c.bf16 %v1712, %v1710
    %v1739 = vpack.c.bf16 %v1715, %v1713
    %v1740 = vpack.c.bf16 %v1716, %v1714
    %v1741 = vpack.c.bf16 %v1719, %v1717
    %v1742 = vpack.c.bf16 %v1720, %v1718
    %v1743 = vpack.c.bf16 %v1723, %v1721
    %v1744 = vpack.c.bf16 %v1724, %v1722
    %v1745 = vpack.c.bf16 %v1727, %v1725
    %v1746 = vpack.c.bf16 %v1728, %v1726
    %v1747 = vpack.c.bf16 %v1731, %v1729
    %v1748 = vpack.c.bf16 %v1732, %v1730
    %v1749 = vld [vmem:[%s7] sm:$0xf]
    %v1750 = vld [vmem:[%s7 + $0x4] sm:$0xf]
    %v1751 = vld [vmem:[%s7 + $0x8] sm:$0xf]
    %v1752 = vld [vmem:[%s7 + $0xc] sm:$0xf]
    %v1753 = vld [vmem:[%s7 + $0x10] sm:$0xf]
    %v1754 = vld [vmem:[%s7 + $0x14] sm:$0xf]
    %v1755 = vld [vmem:[%s7 + $0x18] sm:$0xf]
    %v1756 = vld [vmem:[%s7 + $0x1c] sm:$0xf]
    %v1757 = vld [vmem:[%s7 + $0x20] sm:$0xf]
    %v1758 = vld [vmem:[%s7 + $0x24] sm:$0xf]
    %v1759 = vld [vmem:[%s7 + $0x28] sm:$0xf]
    %v1760 = vld [vmem:[%s7 + $0x2c] sm:$0xf]
    %v1761 = vld [vmem:[%s7 + $0x30] sm:$0xf]
    %v1762 = vld [vmem:[%s7 + $0x34] sm:$0xf]
    %v1763 = vld [vmem:[%s7 + $0x38] sm:$0xf]
    %v1764 = vld [vmem:[%s7 + $0x3c] sm:$0xf]
    %v1765 = vld [vmem:[%s7 + $0x40] sm:$0xf]
    %v1766 = vld [vmem:[%s7 + $0x44] sm:$0xf]
    %v1767 = vld [vmem:[%s7 + $0x48] sm:$0xf]
    %v1768 = vld [vmem:[%s7 + $0x4c] sm:$0xf]
    %v1769 = vld [vmem:[%s7 + $0x50] sm:$0xf]
    %v1770 = vld [vmem:[%s7 + $0x54] sm:$0xf]
    %v1771 = vld [vmem:[%s7 + $0x58] sm:$0xf]
    %v1772 = vld [vmem:[%s7 + $0x5c] sm:$0xf]
    %v1773 = vld [vmem:[%s7 + $0x60] sm:$0xf]
    %v1774 = vld [vmem:[%s7 + $0x64] sm:$0xf]
    %v1775 = vld [vmem:[%s7 + $0x68] sm:$0xf]
    %v1776 = vld [vmem:[%s7 + $0x6c] sm:$0xf]
    %v1777 = vld [vmem:[%s7 + $0x70] sm:$0xf]
    %v1778 = vld [vmem:[%s7 + $0x74] sm:$0xf]
    %v1779 = vld [vmem:[%s7 + $0x78] sm:$0xf]
    %v1780 = vld [vmem:[%s7 + $0x7c] sm:$0xf]
    %v1781 = vld [vmem:[%s8] sm:$0x1]
    %v1783 = vlaneseq
    %v1784 = vshrl.u32 %v1783, 7
    %v1785 = vsub.s32 0, %v1784
    %v1786 = vrot.slane %v1781, %v1785
    %v1820 = vunpack.c.l.b16 %v1749
    %v1821 = vunpack.c.l.b16 %v1750
    %v1822 = vunpack.c.l.b16 %v1751
    %v1823 = vunpack.c.l.b16 %v1752
    %v1824 = vunpack.c.l.b16 %v1753
    %v1825 = vunpack.c.l.b16 %v1754
    %v1826 = vunpack.c.l.b16 %v1755
    %v1827 = vunpack.c.l.b16 %v1756
    %v1828 = vunpack.c.l.b16 %v1757
    %v1829 = vunpack.c.l.b16 %v1758
    %v1830 = vunpack.c.l.b16 %v1759
    %v1831 = vunpack.c.l.b16 %v1760
    %v1832 = vunpack.c.l.b16 %v1761
    %v1833 = vunpack.c.l.b16 %v1762
    %v1834 = vunpack.c.l.b16 %v1763
    %v1835 = vunpack.c.l.b16 %v1764
    %v1836 = vunpack.c.l.b16 %v1765
    %v1837 = vunpack.c.l.b16 %v1766
    %v1838 = vunpack.c.l.b16 %v1767
    %v1839 = vunpack.c.l.b16 %v1768
    %v1840 = vunpack.c.l.b16 %v1769
    %v1841 = vunpack.c.l.b16 %v1770
    %v1842 = vunpack.c.l.b16 %v1771
    %v1843 = vunpack.c.l.b16 %v1772
    %v1844 = vunpack.c.l.b16 %v1773
    %v1845 = vunpack.c.l.b16 %v1774
    %v1846 = vunpack.c.l.b16 %v1775
    %v1847 = vunpack.c.l.b16 %v1776
    %v1848 = vunpack.c.l.b16 %v1777
    %v1849 = vunpack.c.l.b16 %v1778
    %v1850 = vunpack.c.l.b16 %v1779
    %v1851 = vunpack.c.l.b16 %v1780
    %v1852 = vpack.c.b16 %v1821, %v1820
    %v1853 = vpack.c.b16 %v1823, %v1822
    %v1854 = vpack.c.b16 %v1825, %v1824
    %v1855 = vpack.c.b16 %v1827, %v1826
    %v1856 = vpack.c.b16 %v1829, %v1828
    %v1857 = vpack.c.b16 %v1831, %v1830
    %v1858 = vpack.c.b16 %v1833, %v1832
    %v1859 = vpack.c.b16 %v1835, %v1834
    %v1860 = vpack.c.b16 %v1837, %v1836
    %v1861 = vpack.c.b16 %v1839, %v1838
    %v1862 = vpack.c.b16 %v1841, %v1840
    %v1863 = vpack.c.b16 %v1843, %v1842
    %v1864 = vpack.c.b16 %v1845, %v1844
    %v1865 = vpack.c.b16 %v1847, %v1846
    %v1866 = vpack.c.b16 %v1849, %v1848
    %v1867 = vpack.c.b16 %v1851, %v1850
    %1884 = vmatprep.subr.bf16.mxu0 0
    %1885 = vmatpush1.bf16.msra.mxu0 %v1852
    %1886 = vmatprep.subr.bf16.mxu0 0
    %1887 = vmatpush1.bf16.msra.mxu0 %v1853
    %1888 = vmatprep.subr.bf16.mxu0 0
    %1889 = vmatpush1.bf16.msra.mxu0 %v1854
    %1890 = vmatprep.subr.bf16.mxu0 0
    %1891 = vmatpush1.bf16.msra.mxu0 %v1855
    %1892 = vmatprep.subr.bf16.mxu0 0
    %1893 = vmatpush1.bf16.msra.mxu0 %v1856
    %1894 = vmatprep.subr.bf16.mxu0 0
    %1895 = vmatpush1.bf16.msra.mxu0 %v1857
    %1896 = vmatprep.subr.bf16.mxu0 0
    %1897 = vmatpush1.bf16.msra.mxu0 %v1858
    %1898 = vmatprep.subr.bf16.mxu0 0
    %1899 = vmatpush1.bf16.msra.mxu0 %v1859
    %1900 = vmatprep.subr.bf16.mxu0 0
    %1901 = vmatpush1.bf16.msra.mxu0 %v1860
    %1902 = vmatprep.subr.bf16.mxu0 0
    %1903 = vmatpush1.bf16.msra.mxu0 %v1861
    %1904 = vmatprep.subr.bf16.mxu0 0
    %1905 = vmatpush1.bf16.msra.mxu0 %v1862
    %1906 = vmatprep.subr.bf16.mxu0 0
    %1907 = vmatpush1.bf16.msra.mxu0 %v1863
    %1908 = vmatprep.subr.bf16.mxu0 0
    %1909 = vmatpush1.bf16.msra.mxu0 %v1864
    %1910 = vmatprep.subr.bf16.mxu0 0
    %1911 = vmatpush1.bf16.msra.mxu0 %v1865
    %1912 = vmatprep.subr.bf16.mxu0 0
    %1913 = vmatpush1.bf16.msra.mxu0 %v1866
    %1914 = vmatprep.subr.bf16.mxu0 0
    %1915 = vmatpush1.bf16.msra.mxu0 %v1867
    %1916 = vmatprep.mubr.bf16.mxu0 %v1734
    %1917 = vmatmul.mubr.bf16.gmra.mrb[0].mxu0 %v1733
    %v1918 = vpop.f32.mrb[0].mxu0
    %v1919 = vadd.f32 %v1786, %v1918
    %v1920 = vpop.f32.mrb[0].mxu0
    %v1921 = vpop.f32.mrb[0].mxu0
    %v1922 = vadd.f32 %v1786, %v1921
    %v1923 = vpop.f32.mrb[0].mxu0
    %1924 = vmatprep.mubr.bf16.mxu0 %v1736
    %1925 = vmatmul.mubr.bf16.gmra.mrb[0].mxu0 %v1735
    %v1926 = vpop.f32.mrb[0].mxu0
    %v1927 = vadd.f32 %v1786, %v1926
    %v1928 = vpop.f32.mrb[0].mxu0
    %v1929 = vpop.f32.mrb[0].mxu0
    %v1930 = vadd.f32 %v1786, %v1929
    %v1931 = vpop.f32.mrb[0].mxu0
    %1932 = vmatprep.mubr.bf16.mxu0 %v1738
    %1933 = vmatmul.mubr.bf16.gmra.mrb[0].mxu0 %v1737
    %v1934 = vpop.f32.mrb[0].mxu0
    %v1935 = vadd.f32 %v1786, %v1934
    %v1936 = vpop.f32.mrb[0].mxu0
    %v1937 = vpop.f32.mrb[0].mxu0
    %v1938 = vadd.f32 %v1786, %v1937
    %v1939 = vpop.f32.mrb[0].mxu0
    %1940 = vmatprep.mubr.bf16.mxu0 %v1740
    %1941 = vmatmul.mubr.bf16.gmra.mrb[0].mxu0 %v1739
    %v1942 = vpop.f32.mrb[0].mxu0
    %v1943 = vadd.f32 %v1786, %v1942
    %v1944 = vpop.f32.mrb[0].mxu0
    %v1945 = vpop.f32.mrb[0].mxu0
    %v1946 = vadd.f32 %v1786, %v1945
    %v1947 = vpop.f32.mrb[0].mxu0
    %1948 = vmatprep.mubr.bf16.mxu0 %v1742
    %1949 = vmatmul.mubr.bf16.gmra.mrb[0].mxu0 %v1741
    %v1950 = vpop.f32.mrb[0].mxu0
    %v1951 = vadd.f32 %v1786, %v1950
    %v1952 = vpop.f32.mrb[0].mxu0
    %v1953 = vpop.f32.mrb[0].mxu0
    %v1954 = vadd.f32 %v1786, %v1953
    %v1955 = vpop.f32.mrb[0].mxu0
    %1956 = vmatprep.mubr.bf16.mxu0 %v1744
    %1957 = vmatmul.mubr.bf16.gmra.mrb[0].mxu0 %v1743
    %v1958 = vpop.f32.mrb[0].mxu0
    %v1959 = vadd.f32 %v1786, %v1958
    %v1960 = vpop.f32.mrb[0].mxu0
    %v1961 = vpop.f32.mrb[0].mxu0
    %v1962 = vadd.f32 %v1786, %v1961
    %v1963 = vpop.f32.mrb[0].mxu0
    %1964 = vmatprep.mubr.bf16.mxu0 %v1746
    %1965 = vmatmul.mubr.bf16.gmra.mrb[0].mxu0 %v1745
    %v1966 = vpop.f32.mrb[0].mxu0
    %v1967 = vadd.f32 %v1786, %v1966
    %v1968 = vpop.f32.mrb[0].mxu0
    %v1969 = vpop.f32.mrb[0].mxu0
    %v1970 = vadd.f32 %v1786, %v1969
    %v1971 = vpop.f32.mrb[0].mxu0
    %1972 = vmatprep.mubr.bf16.mxu0 %v1748
    %1973 = vmatmul.mubr.bf16.gmra.mrb[0].mxu0 %v1747
    %v1974 = vpop.f32.mrb[0].mxu0
    %v1975 = vadd.f32 %v1786, %v1974
    %v1976 = vpop.f32.mrb[0].mxu0
    %v1977 = vpop.f32.mrb[0].mxu0
    %v1978 = vadd.f32 %v1786, %v1977
    %v1979 = vpop.f32.mrb[0].mxu0
    %1980 = vdwg.mxu0
    %v1981 = vmax.f32 %v1919, 0.0
    %v1982 = vmax.f32 %v1922, 0.0
    %v1983 = vmax.f32 %v1927, 0.0
    %v1984 = vmax.f32 %v1930, 0.0
    %v1985 = vmax.f32 %v1935, 0.0
    %v1986 = vmax.f32 %v1938, 0.0
    %v1987 = vmax.f32 %v1943, 0.0
    %v1988 = vmax.f32 %v1946, 0.0
    %v1989 = vmax.f32 %v1951, 0.0
    %v1990 = vmax.f32 %v1954, 0.0
    %v1991 = vmax.f32 %v1959, 0.0
    %v1992 = vmax.f32 %v1962, 0.0
    %v1993 = vmax.f32 %v1967, 0.0
    %v1994 = vmax.f32 %v1970, 0.0
    %v1995 = vmax.f32 %v1975, 0.0
    %v1996 = vmax.f32 %v1978, 0.0
    %v1997 = vpack.c.bf16 %v1982, %v1981
    %v1998 = vpack.c.bf16 %v1984, %v1983
    %v1999 = vpack.c.bf16 %v1986, %v1985
    %v2000 = vpack.c.bf16 %v1988, %v1987
    %v2001 = vpack.c.bf16 %v1990, %v1989
    %v2002 = vpack.c.bf16 %v1992, %v1991
    %v2003 = vpack.c.bf16 %v1994, %v1993
    %v2004 = vpack.c.bf16 %v1996, %v1995
    %v2005 = vld [vmem:[#allocation7] sm:$0xf]
    %v2006 = vld [vmem:[#allocation7 + $0x4] sm:$0xf]
    %v2007 = vld [vmem:[#allocation7 + $0x8] sm:$0xf]
    %v2008 = vld [vmem:[#allocation7 + $0xc] sm:$0xf]
    %v2009 = vld [vmem:[#allocation7 + $0x10] sm:$0xf]
    %v2010 = vld [vmem:[#allocation7 + $0x14] sm:$0xf]
    %v2011 = vld [vmem:[#allocation7 + $0x18] sm:$0xf]
    %v2012 = vld [vmem:[#allocation7 + $0x1c] sm:$0xf]
    %v2013 = vld [vmem:[#allocation7 + $0x20] sm:$0xf]
    %v2014 = vld [vmem:[#allocation7 + $0x24] sm:$0xf]
    %v2015 = vld [vmem:[#allocation7 + $0x28] sm:$0xf]
    %v2016 = vld [vmem:[#allocation7 + $0x2c] sm:$0xf]
    %v2017 = vld [vmem:[#allocation7 + $0x30] sm:$0xf]
    %v2018 = vld [vmem:[#allocation7 + $0x34] sm:$0xf]
    %v2019 = vld [vmem:[#allocation7 + $0x38] sm:$0xf]
    %v2020 = vld [vmem:[#allocation7 + $0x3c] sm:$0xf]
    %v2021 = vld [vmem:[%s10] sm:$0x1]
    %v2023 = vlaneseq
    %v2024 = vshrl.u32 %v2023, 7
    %v2025 = vsub.s32 0, %v2024
    %v2026 = vrot.slane %v2021, %v2025
    %v2044 = vunpack.c.l.b16 %v2005
    %v2045 = vunpack.c.l.b16 %v2006
    %v2046 = vunpack.c.l.b16 %v2007
    %v2047 = vunpack.c.l.b16 %v2008
    %v2048 = vunpack.c.l.b16 %v2009
    %v2049 = vunpack.c.l.b16 %v2010
    %v2050 = vunpack.c.l.b16 %v2011
    %v2051 = vunpack.c.l.b16 %v2012
    %v2052 = vunpack.c.l.b16 %v2013
    %v2053 = vunpack.c.l.b16 %v2014
    %v2054 = vunpack.c.l.b16 %v2015
    %v2055 = vunpack.c.l.b16 %v2016
    %v2056 = vunpack.c.l.b16 %v2017
    %v2057 = vunpack.c.l.b16 %v2018
    %v2058 = vunpack.c.l.b16 %v2019
    %v2059 = vunpack.c.l.b16 %v2020
    %v2060 = vpack.c.b16 %v2045, %v2044
    %v2061 = vpack.c.b16 %v2047, %v2046
    %v2062 = vpack.c.b16 %v2049, %v2048
    %v2063 = vpack.c.b16 %v2051, %v2050
    %v2064 = vpack.c.b16 %v2053, %v2052
    %v2065 = vpack.c.b16 %v2055, %v2054
    %v2066 = vpack.c.b16 %v2057, %v2056
    %v2067 = vpack.c.b16 %v2059, %v2058
    %2076 = vmatprep.subr.bf16.mxu0 0
    %2077 = vmatpush1.bf16.msra.mxu0 %v2060
    %2078 = vmatprep.subr.bf16.mxu0 0
    %2079 = vmatpush1.bf16.msra.mxu0 %v2061
    %2080 = vmatprep.subr.bf16.mxu0 0
    %2081 = vmatpush1.bf16.msra.mxu0 %v2062
    %2082 = vmatprep.subr.bf16.mxu0 0
    %2083 = vmatpush1.bf16.msra.mxu0 %v2063
    %2084 = vmatprep.subr.bf16.mxu0 0
    %2085 = vmatpush1.bf16.msra.mxu0 %v2064
    %2086 = vmatprep.subr.bf16.mxu0 0
    %2087 = vmatpush1.bf16.msra.mxu0 %v2065
    %2088 = vmatprep.subr.bf16.mxu0 0
    %2089 = vmatpush1.bf16.msra.mxu0 %v2066
    %2090 = vmatprep.subr.bf16.mxu0 0
    %2091 = vmatpush1.bf16.msra.mxu0 %v2067
    %2092 = vmatprep.subr.bf16.mxu0 0
    %2093 = vmatpush1.bf16.msra.mxu0 0
    %2094 = vmatprep.subr.bf16.mxu0 0
    %2095 = vmatpush1.bf16.msra.mxu0 0
    %2096 = vmatprep.subr.bf16.mxu0 0
    %2097 = vmatpush1.bf16.msra.mxu0 0
    %2098 = vmatprep.subr.bf16.mxu0 0
    %2099 = vmatpush1.bf16.msra.mxu0 0
    %2100 = vmatprep.subr.bf16.mxu0 0
    %2101 = vmatpush1.bf16.msra.mxu0 0
    %2102 = vmatprep.subr.bf16.mxu0 0
    %2103 = vmatpush1.bf16.msra.mxu0 0
    %2104 = vmatprep.subr.bf16.mxu0 0
    %2105 = vmatpush1.bf16.msra.mxu0 0
    %2106 = vmatprep.subr.bf16.mxu0 0
    %2107 = vmatpush1.bf16.msra.mxu0 0
    %2108 = vmatprep.mubr.bf16.mxu0 0
    %2109 = vmatmul.mubr.bf16.gmra.mrb[0].mxu0 %v1997
    %v2110 = vpop.f32.mrb[0].mxu0
    %v2111 = vadd.f32 %v2026, %v2110
    %v2112 = vpop.f32.mrb[0].mxu0
    %v2113 = vpop.f32.mrb[0].mxu0
    %v2114 = vadd.f32 %v2026, %v2113
    %v2115 = vpop.f32.mrb[0].mxu0
    %2116 = vmatprep.mubr.bf16.mxu0 0
    %2117 = vmatmul.mubr.bf16.gmra.mrb[0].mxu0 %v1998
    %v2118 = vpop.f32.mrb[0].mxu0
    %v2119 = vadd.f32 %v2026, %v2118
    %v2120 = vpop.f32.mrb[0].mxu0
    %v2121 = vpop.f32.mrb[0].mxu0
    %v2122 = vadd.f32 %v2026, %v2121
    %v2123 = vpop.f32.mrb[0].mxu0
    %2124 = vmatprep.mubr.bf16.mxu0 0
    %2125 = vmatmul.mubr.bf16.gmra.mrb[0].mxu0 %v1999
    %v2126 = vpop.f32.mrb[0].mxu0
    %v2127 = vadd.f32 %v2026, %v2126
    %v2128 = vpop.f32.mrb[0].mxu0
    %v2129 = vpop.f32.mrb[0].mxu0
    %v2130 = vadd.f32 %v2026, %v2129
    %v2131 = vpop.f32.mrb[0].mxu0
    %2132 = vmatprep.mubr.bf16.mxu0 0
    %2133 = vmatmul.mubr.bf16.gmra.mrb[0].mxu0 %v2000
    %v2134 = vpop.f32.mrb[0].mxu0
    %v2135 = vadd.f32 %v2026, %v2134
    %v2136 = vpop.f32.mrb[0].mxu0
    %v2137 = vpop.f32.mrb[0].mxu0
    %v2138 = vadd.f32 %v2026, %v2137
    %v2139 = vpop.f32.mrb[0].mxu0
    %2140 = vmatprep.mubr.bf16.mxu0 0
    %2141 = vmatmul.mubr.bf16.gmra.mrb[0].mxu0 %v2001
    %v2142 = vpop.f32.mrb[0].mxu0
    %v2143 = vadd.f32 %v2026, %v2142
    %v2144 = vpop.f32.mrb[0].mxu0
    %v2145 = vpop.f32.mrb[0].mxu0
    %v2146 = vadd.f32 %v2026, %v2145
    %v2147 = vpop.f32.mrb[0].mxu0
    %2148 = vmatprep.mubr.bf16.mxu0 0
    %2149 = vmatmul.mubr.bf16.gmra.mrb[0].mxu0 %v2002
    %v2150 = vpop.f32.mrb[0].mxu0
    %v2151 = vadd.f32 %v2026, %v2150
    %v2152 = vpop.f32.mrb[0].mxu0
    %v2153 = vpop.f32.mrb[0].mxu0
    %v2154 = vadd.f32 %v2026, %v2153
    %v2155 = vpop.f32.mrb[0].mxu0
    %2156 = vmatprep.mubr.bf16.mxu0 0
    %2157 = vmatmul.mubr.bf16.gmra.mrb[0].mxu0 %v2003
    %v2158 = vpop.f32.mrb[0].mxu0
    %v2159 = vadd.f32 %v2026, %v2158
    %v2160 = vpop.f32.mrb[0].mxu0
    %v2161 = vpop.f32.mrb[0].mxu0
    %v2162 = vadd.f32 %v2026, %v2161
    %v2163 = vpop.f32.mrb[0].mxu0
    %2164 = vmatprep.mubr.bf16.mxu0 0
    %2165 = vmatmul.mubr.bf16.gmra.mrb[0].mxu0 %v2004
    %v2166 = vpop.f32.mrb[0].mxu0
    %v2167 = vadd.f32 %v2026, %v2166
    %v2168 = vpop.f32.mrb[0].mxu0
    %v2169 = vpop.f32.mrb[0].mxu0
    %v2170 = vadd.f32 %v2026, %v2169
    %v2171 = vpop.f32.mrb[0].mxu0
    %2172 = vdwg.mxu0
    %v2173 = vpack.c.bf16 %v2114, %v2111
    %v2174 = vpack.c.bf16 %v2122, %v2119
    %v2175 = vpack.c.bf16 %v2130, %v2127
    %v2176 = vpack.c.bf16 %v2138, %v2135
    %v2177 = vpack.c.bf16 %v2146, %v2143
    %v2178 = vpack.c.bf16 %v2154, %v2151
    %v2179 = vpack.c.bf16 %v2162, %v2159
    %v2180 = vpack.c.bf16 %v2170, %v2167
    %v2189 = vunpack.c.l.b16 %v2173
    %v2190 = vunpack.c.h.b16 %v2173
    %v2191 = vunpack.c.l.b16 %v2174
    %v2192 = vunpack.c.h.b16 %v2174
    %v2193 = vunpack.c.l.b16 %v2175
    %v2194 = vunpack.c.h.b16 %v2175
    %v2195 = vunpack.c.l.b16 %v2176
    %v2196 = vunpack.c.h.b16 %v2176
    %v2197 = vunpack.c.l.b16 %v2177
    %v2198 = vunpack.c.h.b16 %v2177
    %v2199 = vunpack.c.l.b16 %v2178
    %v2200 = vunpack.c.h.b16 %v2178
    %v2201 = vunpack.c.l.b16 %v2179
    %v2202 = vunpack.c.h.b16 %v2179
    %v2203 = vunpack.c.l.b16 %v2180
    %v2204 = vunpack.c.h.b16 %v2180
    %v2205 = vpack.c.b16 %v2189, %v2189
    %v2206 = vpack.c.b16 %v2190, %v2190
    %v2207 = vpack.c.b16 %v2191, %v2191
    %v2208 = vpack.c.b16 %v2192, %v2192
    %v2209 = vpack.c.b16 %v2193, %v2193
    %v2210 = vpack.c.b16 %v2194, %v2194
    %v2211 = vpack.c.b16 %v2195, %v2195
    %v2212 = vpack.c.b16 %v2196, %v2196
    %v2213 = vpack.c.b16 %v2197, %v2197
    %v2214 = vpack.c.b16 %v2198, %v2198
    %v2215 = vpack.c.b16 %v2199, %v2199
    %v2216 = vpack.c.b16 %v2200, %v2200
    %v2217 = vpack.c.b16 %v2201, %v2201
    %v2218 = vpack.c.b16 %v2202, %v2202
    %v2219 = vpack.c.b16 %v2203, %v2203
    %v2220 = vpack.c.b16 %v2204, %v2204
    %2237 = vst [vmem:[#allocation8] sm:$0xf] %v2205
    %2238 = vst [vmem:[#allocation8 + $0x4] sm:$0xf] %v2206
    %2239 = vst [vmem:[#allocation8 + $0x8] sm:$0xf] %v2207
    %2240 = vst [vmem:[#allocation8 + $0xc] sm:$0xf] %v2208
    %2241 = vst [vmem:[#allocation8 + $0x10] sm:$0xf] %v2209
    %2242 = vst [vmem:[#allocation8 + $0x14] sm:$0xf] %v2210
    %2243 = vst [vmem:[#allocation8 + $0x18] sm:$0xf] %v2211
    %2244 = vst [vmem:[#allocation8 + $0x1c] sm:$0xf] %v2212
    %2245 = vst [vmem:[#allocation8 + $0x20] sm:$0xf] %v2213
    %2246 = vst [vmem:[#allocation8 + $0x24] sm:$0xf] %v2214
    %2247 = vst [vmem:[#allocation8 + $0x28] sm:$0xf] %v2215
    %2248 = vst [vmem:[#allocation8 + $0x2c] sm:$0xf] %v2216
    %2249 = vst [vmem:[#allocation8 + $0x30] sm:$0xf] %v2217
    %2250 = vst [vmem:[#allocation8 + $0x34] sm:$0xf] %v2218
    %2251 = vst [vmem:[#allocation8 + $0x38] sm:$0xf] %v2219
    %2252 = vst [vmem:[#allocation8 + $0x3c] sm:$0xf] %v2220
    // Predicated region
    $region58: #{tpu_custom_call.1} parent=1 // pred_check
      _
    $region59: #{tpu_custom_call.1} parent=1 // pred_check_branch
      %2254 = sbr.rel (0) target = $region61
    $region60: #{tpu_custom_call.1} parent=1 // pred_region
      %s2256 = ssub.s32 1024, 1024
      %2257 = vsyncadd [#allocation4], %s2256
      %s2258 = sshll.u32 [#allocation8], 4
      %s2259 = int_to_ptr.vmem [resolvable:$true] %s2258
      %2264 = dma.vmem_to_hbm [thread:$0]  %s2259, 1024, %s11, [#allocation4], 64, 64, 4
    $region61: #{tpu_custom_call.1} parent=1 // pred_fallthru
      _
    // Predicated region
    $region62: #{tpu_custom_call.1} parent=1 // pred_check
      _
    $region63: #{tpu_custom_call.1} parent=1 // pred_check_branch
      %2266 = sbr.rel (0) target = $region65
    $region64: #{tpu_custom_call.1} parent=1 // pred_region
      %2267 = dma.done [#allocation4], 1024
    $region65: #{tpu_custom_call.1} parent=1 // pred_fallthru
      _
    %2268 = vsyncpa [#allocation3], 1
    %2269 = vsyncpa [#allocation6], 1
    %2270 = vsyncpa [#allocation4], 1

</llo_original>
